<compile_context>
chip_gen: v7x
topology: tpu7x:2x2x1
jax: 0.10.0
libtpu: 0.0.40
codegen_flags: <defaults>
</compile_context>

<pallas_src>
import functools

import jax
import jax.numpy as jnp
from jax.experimental import pallas as pl
from jax.experimental.pallas import tpu as pltpu


@functools.lru_cache(maxsize=None)
def _vmem_limit_bytes():
    # 64 MiB scoped on 128-MiB-VMEM parts (v5e/v6e); 32 MiB on v7x (64 MiB phys).
    try:
        cap = pltpu.get_tpu_info().vmem_capacity_bytes
        return 64 * 1024 * 1024 if cap >= 128 * 1024 * 1024 else 32 * 1024 * 1024
    except Exception:
        return 32 * 1024 * 1024


# ----------------------------------------------------------------------------
# Kernel 1: query encoder  (tiled contraction over F) + L2 normalize
#   x, w streamed as bf16; f32 accumulation directly in the resident out block
# ----------------------------------------------------------------------------
def _fc_norm_kernel(x_ref, w_ref, b_ref, out_ref):
    k = pl.program_id(1)

    @pl.when(k == 0)
    def _():
        out_ref[...] = jnp.zeros_like(out_ref)

    out_ref[...] += jnp.dot(
        x_ref[...], w_ref[...], preferred_element_type=jnp.float32)

    @pl.when(k == pl.num_programs(1) - 1)
    def _():
        feat = out_ref[...] + b_ref[...]                      # bias only in epilogue
        sq = jnp.sum(feat * feat, axis=-1, keepdims=True)
        # F.normalize(dim=1): x / max(||x||, 1e-12) == x * rsqrt(max(sq, 1e-24))
        out_ref[...] = feat * jax.lax.rsqrt(jnp.maximum(sq, 1e-24))


def encode_query(x_bf16, w_bf16, b, *, tn=128, tk=512):
    n, f = x_bf16.shape
    d = w_bf16.shape[1]
    tn = min(tn, n)
    tk = min(tk, f)
    assert n % tn == 0 and f % tk == 0
    return pl.pallas_call(
        _fc_norm_kernel,
        out_shape=jax.ShapeDtypeStruct((n, d), jnp.float32),
        grid_spec=pltpu.PrefetchScalarGridSpec(
            num_scalar_prefetch=0,
            grid=(n // tn, f // tk),
            in_specs=[
                pl.BlockSpec((tn, tk), lambda i, k: (i, k)),
                pl.BlockSpec((tk, d), lambda i, k: (k, 0)),
                pl.BlockSpec((1, d), lambda i, k: (0, 0)),
            ],
            out_specs=pl.BlockSpec((tn, d), lambda i, k: (i, 0)),
        ),
        compiler_params=pltpu.CompilerParams(
            dimension_semantics=("parallel", "arbitrary"),
            vmem_limit_bytes=_vmem_limit_bytes(),
        ),
    )(x_bf16, w_bf16, b.reshape(1, d))


# ----------------------------------------------------------------------------
# Kernel 2: key encoder with fused momentum update of the weight
#   per F-tile:  w_new = m*w_k + (1-m)*w_q  (f32, written out),
#                out += x_bf16 @ w_new.bf16
#   epilogue:    bias add + L2 normalize (in-place in the resident out block)
# ----------------------------------------------------------------------------
def _fc_norm_momentum_kernel(x_ref, wk_ref, wq_ref, b_ref, out_ref, wnew_ref, *, m):
    k = pl.program_id(0)

    @pl.when(k == 0)
    def _():
        out_ref[...] = jnp.zeros_like(out_ref)

    w_new = wk_ref[...] * m + wq_ref[...] * (1.0 - m)         # f32 master weights
    wnew_ref[...] = w_new
    out_ref[...] += jnp.dot(
        x_ref[...], w_new.astype(jnp.bfloat16),
        preferred_element_type=jnp.float32)

    @pl.when(k == pl.num_programs(0) - 1)
    def _():
        feat = out_ref[...] + b_ref[...]
        sq = jnp.sum(feat * feat, axis=-1, keepdims=True)
        out_ref[...] = feat * jax.lax.rsqrt(jnp.maximum(sq, 1e-24))


def encode_key_momentum(x_bf16, w_k, w_q, b_new, *, m, tk=512):
    n, f = x_bf16.shape
    d = w_k.shape[1]
    tk = min(tk, f)
    assert f % tk == 0 and n % 8 == 0
    # TODO(synk): on v7x a second ("parallel") N axis would use both TensorCores;
    # kept single-axis here because the w_new block would then be revisited
    # across a parallel axis (flagged as a correctness risk in review).
    k_feat, w_new = pl.pallas_call(
        functools.partial(_fc_norm_momentum_kernel, m=m),
        out_shape=(jax.ShapeDtypeStruct((n, d), jnp.float32),
                   jax.ShapeDtypeStruct((f, d), jnp.float32)),
        grid_spec=pltpu.PrefetchScalarGridSpec(
            num_scalar_prefetch=0,
            grid=(f // tk,),
            in_specs=[
                pl.BlockSpec((n, tk), lambda k: (0, k)),
                pl.BlockSpec((tk, d), lambda k: (k, 0)),
                pl.BlockSpec((tk, d), lambda k: (k, 0)),
                pl.BlockSpec((1, d), lambda k: (0, 0)),
            ],
            out_specs=(pl.BlockSpec((n, d), lambda k: (0, 0)),
                       pl.BlockSpec((tk, d), lambda k: (k, 0))),
        ),
        compiler_params=pltpu.CompilerParams(
            dimension_semantics=("arbitrary",),
            vmem_limit_bytes=_vmem_limit_bytes(),
        ),
    )(x_bf16, w_k, w_q, b_new.reshape(1, d))
    return k_feat, w_new


# ----------------------------------------------------------------------------
# Kernel 3: MoCo head (lane-dense outputs, no in-kernel concat)
#   l_neg tile = (q * 1/T).bf16 @ queue_tile.bf16     (N-tile, queue-col-tile)
#   l_pos      = sum(q * k, -1) / T  -> 128-lane padded output, written once
# ----------------------------------------------------------------------------
def _moco_head_kernel(q_ref, k_ref, queue_ref, lneg_ref, lpos_ref, *, inv_t):
    q = q_ref[...]                                            # f32 (tn, d), resident
    # fold 1/T into the small (tn, d) operand instead of scaling (tn, tkq) result
    qs = (q * inv_t).astype(jnp.bfloat16)
    lneg_ref[...] = jnp.dot(qs, queue_ref[...], preferred_element_type=jnp.float32)

    @pl.when(pl.program_id(1) == 0)
    def _():
        lpos = jnp.sum(q * k_ref[...], axis=-1, keepdims=True) * inv_t
        lpos_ref[...] = jnp.broadcast_to(lpos, lpos_ref.shape)


def moco_head(q, k, queue_bf16, t, *, tn=128, tkq=1024):
    n, d = q.shape
    kq = queue_bf16.shape[1]
    tn = min(tn, n)
    tkq = min(tkq, kq)
    assert n % tn == 0 and kq % tkq == 0
    # TODO(synk): if the profile still shows exposed DMA on the queue stream,
    # add pipeline_mode=pl.Buffered(3) to the queue BlockSpec.
    l_neg, l_pos_pad = pl.pallas_call(
        functools.partial(_moco_head_kernel, inv_t=1.0 / t),
        out_shape=(jax.ShapeDtypeStruct((n, kq), jnp.float32),
                   jax.ShapeDtypeStruct((n, 128), jnp.float32)),
        grid_spec=pltpu.PrefetchScalarGridSpec(
            num_scalar_prefetch=0,
            grid=(n // tn, kq // tkq),
            in_specs=[
                pl.BlockSpec((tn, d), lambda i, j: (i, 0)),
                pl.BlockSpec((tn, d), lambda i, j: (i, 0)),
                pl.BlockSpec((d, tkq), lambda i, j: (0, j)),
            ],
            out_specs=(pl.BlockSpec((tn, tkq), lambda i, j: (i, j)),
                       pl.BlockSpec((tn, 128), lambda i, j: (i, 0))),
        ),
        compiler_params=pltpu.CompilerParams(
            dimension_semantics=("parallel", "arbitrary"),
            vmem_limit_bytes=_vmem_limit_bytes(),
        ),
    )(q, k, queue_bf16)
    # stitch [l_pos | l_neg] in the wrapper so the kernel stores stay lane-dense
    logits = jnp.concatenate([l_pos_pad[:, :1], l_neg], axis=1)
    return logits


# ----------------------------------------------------------------------------
# MoCo forward (functional: returns new key-encoder params / queue state too)
# ----------------------------------------------------------------------------
def moco_forward(im_q, im_k, params_q, params_k, queue, queue_ptr,
                 shuffle_key, *, m=0.999, t=0.01):
    n = im_q.shape[0]
    kq = queue.shape[1]

    # ---- query branch (bf16 matmul operands, f32 accumulate/normalize) ----
    xq = im_q.reshape(n, -1).astype(jnp.bfloat16)
    q = encode_query(xq, params_q["w"].astype(jnp.bfloat16), params_q["b"])

    # ---- key branch (no-grad in torch; values identical here) ----
    # bias momentum update is tiny -> plain JAX (XLA fuses at HBM roofline);
    # weight momentum update is fused into the key-encoder kernel (f32 master).
    b_new = params_k["b"] * m + params_q["b"] * (1.0 - m)

    # batch shuffle (single-device BN trick)
    idx_shuffle = jax.random.permutation(shuffle_key, n)
    idx_unshuffle = jnp.argsort(idx_shuffle)
    im_k_shuf = im_k[idx_shuffle]
    xk = im_k_shuf.reshape(n, -1).astype(jnp.bfloat16)

    k, w_new = encode_key_momentum(xk, params_k["w"], params_q["w"], b_new, m=m)
    k = k[idx_unshuffle]
    new_params_k = {"w": w_new, "b": b_new}

    # ---- contrastive logits (queue streamed as bf16; state stays f32) ----
    logits = moco_head(q, k, queue.astype(jnp.bfloat16), t)
    labels = jnp.zeros((n,), dtype=jnp.int32)

    # ---- dequeue & enqueue (ring buffer; glue) ----
    # TODO(synk): like the PyTorch original this assumes K % batch == 0 so the
    # write never wraps past the end of the queue.
    ptr = queue_ptr[0]
    new_queue = jax.lax.dynamic_update_slice(queue, k.T, (0, ptr))
    new_ptr = jnp.array([(ptr + n) % kq], dtype=jnp.int32)

    return logits, labels, new_params_k, new_queue, new_ptr


# ----------------------------------------------------------------------------
# Plain-JAX reference (f32) for a loose numerical check
# ----------------------------------------------------------------------------
def reference_forward(im_q, im_k, params_q, params_k, queue, shuffle_key, *, m, t):
    n = im_q.shape[0]

    def enc(x, w, b):
        feat = x.reshape(n, -1) @ w + b
        nrm = jnp.sqrt(jnp.sum(feat * feat, axis=1, keepdims=True))
        return feat / jnp.maximum(nrm, 1e-12)

    q = enc(im_q, params_q["w"], params_q["b"])
    w_new = params_k["w"] * m + params_q["w"] * (1.0 - m)
    b_new = params_k["b"] * m + params_q["b"] * (1.0 - m)
    idx_shuffle = jax.random.permutation(shuffle_key, n)
    idx_unshuffle = jnp.argsort(idx_shuffle)
    k = enc(im_k[idx_shuffle], w_new, b_new)[idx_unshuffle]
    l_pos = jnp.sum(q * k, axis=1, keepdims=True)
    l_neg = q @ queue
    logits = jnp.concatenate([l_pos, l_neg], axis=1) / t
    return logits, k, w_new


# ----------------------------------------------------------------------------
if __name__ == "__main__":
    # small shapes consistent with the module:
    #   images NCHW, batch=16, C=4, H=W=16 ; dim=128 ; K=1024 (K % batch == 0)
    N, C, H, W = 16, 4, 16, 16
    DIM, K, M, T = 128, 1024, 0.999, 0.01
    F = C * H * W

    root = jax.random.PRNGKey(0)
    k_imq, k_imk, k_w, k_queue, k_shuf = jax.random.split(root, 5)

    im_q = jax.random.normal(k_imq, (N, C, H, W), dtype=jnp.float32)
    im_k = jax.random.normal(k_imk, (N, C, H, W), dtype=jnp.float32)

    # synthetic base-encoder params (fc: F -> DIM); key encoder starts as copy
    w_q = jax.random.normal(k_w, (F, DIM), dtype=jnp.float32) * 0.02
    b_q = jnp.zeros((DIM,), dtype=jnp.float32)
    params_q = {"w": w_q, "b": b_q}
    params_k = {"w": w_q, "b": b_q}   # param_k.data.copy_(param_q.data)

    # queue buffer: randn(dim, K) normalized along dim=0
    queue = jax.random.normal(k_queue, (DIM, K), dtype=jnp.float32)
    queue = queue / jnp.maximum(
        jnp.sqrt(jnp.sum(queue * queue, axis=0, keepdims=True)), 1e-12)
    queue_ptr = jnp.zeros((1,), dtype=jnp.int32)

    fwd = jax.jit(functools.partial(moco_forward, m=M, t=T))
    logits, labels, new_params_k, new_queue, new_ptr = fwd(
        im_q, im_k, params_q, params_k, queue, queue_ptr, k_shuf)
    jax.block_until_ready((logits, labels, new_queue, new_ptr))

    # shape / state checks
    assert logits.shape == (N, 1 + K) and labels.shape == (N,)
    assert new_queue.shape == (DIM, K) and int(new_ptr[0]) == N % K
    assert new_params_k["w"].shape == (F, DIM)

    # loose numerical check vs plain-JAX f32 reference (kernels use bf16 MXU
    # operands with f32 accumulation, so tolerances are generous)
    ref_logits, ref_k, ref_w_new = reference_forward(
        im_q, im_k, params_q, params_k, queue, k_shuf, m=M, t=T)
    assert jnp.allclose(new_params_k["w"], ref_w_new, atol=1e-6), "momentum update mismatch"
    assert float(jnp.max(jnp.abs(logits - ref_logits))) < 1.0, "logits mismatch"
    assert float(jnp.max(jnp.abs(new_queue[:, :N] - ref_k.T))) < 5e-2, "queue enqueue mismatch"
    assert bool(jnp.all(jnp.isfinite(logits)))

    print("KERNEL_OK")
</pallas_src>

<mosaic_0001>
module attributes {stable_mosaic.version = 11 : i64} {
  func.func @_fc_norm_momentum_kernel(%arg0: i32, %arg1: memref<16x512xbf16, #tpu.memory_space<vmem>>, %arg2: memref<512x128xf32, #tpu.memory_space<vmem>>, %arg3: memref<512x128xf32, #tpu.memory_space<vmem>>, %arg4: memref<1x128xf32, #tpu.memory_space<vmem>>, %arg5: memref<16x128xf32, #tpu.memory_space<vmem>>, %arg6: memref<512x128xf32, #tpu.memory_space<vmem>>) attributes {dimension_semantics = [#tpu.dimension_semantics<arbitrary>], iteration_bounds = array<i64: 2>, scalar_prefetch = 0 : i64, scratch_operands = 0 : i64, tpu.core_type = #tpu.core_type<tc>, window_params = [{transform_indices = @transform_0, window_bounds = array<i64: 16, 512>}, {transform_indices = @transform_1, window_bounds = array<i64: 512, 128>}, {transform_indices = @transform_2, window_bounds = array<i64: 512, 128>}, {pipeline_mode = #tpu.pipeline_mode<synchronous>, transform_indices = @transform_3, window_bounds = array<i64: 1, 128>}, {pipeline_mode = #tpu.pipeline_mode<synchronous>, transform_indices = @transform_4, window_bounds = array<i64: 16, 128>}, {transform_indices = @transform_5, window_bounds = array<i64: 512, 128>}]} {
    %c0_i32 = arith.constant 0 : i32
    %0 = arith.cmpi eq, %arg0, %c0_i32 : i32
    %1 = arith.extui %0 : i1 to i32
    %c0_i32_0 = arith.constant 0 : i32
    %2 = arith.cmpi ne, %1, %c0_i32_0 : i32
    scf.if %2 {
      %cst_15 = arith.constant 0.000000e+00 : f32
      %20 = vector.broadcast %cst_15 : f32 to vector<16x128xf32>
      %c0_16 = arith.constant 0 : index
      %c0_17 = arith.constant 0 : index
      %21 = vector.load %arg5[%c0_16, %c0_17] : memref<16x128xf32, #tpu.memory_space<vmem>>, vector<16x128xf32>
      tpu.vector_store %arg5[%c0_16, %c0_17], %20 {strides = array<i32>} : memref<16x128xf32, #tpu.memory_space<vmem>>, vector<16x128xf32>,
    } else {
    }
    %c0 = arith.constant 0 : index
    %c0_1 = arith.constant 0 : index
    %3 = vector.load %arg2[%c0, %c0_1] : memref<512x128xf32, #tpu.memory_space<vmem>>, vector<512x128xf32>
    %cst = arith.constant 9.990000e-01 : f32
    %4 = vector.broadcast %cst : f32 to vector<512x128xf32>
    %5 = arith.mulf %3, %4 : vector<512x128xf32>
    %c0_2 = arith.constant 0 : index
    %c0_3 = arith.constant 0 : index
    %6 = vector.load %arg3[%c0_2, %c0_3] : memref<512x128xf32, #tpu.memory_space<vmem>>, vector<512x128xf32>
    %cst_4 = arith.constant 1.000000e-03 : f32
    %7 = vector.broadcast %cst_4 : f32 to vector<512x128xf32>
    %8 = arith.mulf %6, %7 : vector<512x128xf32>
    %9 = arith.addf %5, %8 : vector<512x128xf32>
    %c0_5 = arith.constant 0 : index
    %c0_6 = arith.constant 0 : index
    %10 = vector.load %arg6[%c0_5, %c0_6] : memref<512x128xf32, #tpu.memory_space<vmem>>, vector<512x128xf32>
    tpu.vector_store %arg6[%c0_5, %c0_6], %9 {strides = array<i32>} : memref<512x128xf32, #tpu.memory_space<vmem>>, vector<512x128xf32>,
    %c0_7 = arith.constant 0 : index
    %c0_8 = arith.constant 0 : index
    %11 = vector.load %arg5[%c0_7, %c0_8] : memref<16x128xf32, #tpu.memory_space<vmem>>, vector<16x128xf32>
    %c0_9 = arith.constant 0 : index
    %c0_10 = arith.constant 0 : index
    %12 = vector.load %arg1[%c0_9, %c0_10] : memref<16x512xbf16, #tpu.memory_space<vmem>>, vector<16x512xbf16>
    %13 = arith.truncf %9 : vector<512x128xf32> to vector<512x128xbf16>
    %cst_11 = arith.constant dense<0.000000e+00> : vector<16x128xf32>
    %14 = tpu.matmul %12, %13, %cst_11 {dimension_numbers = #tpu.dot_dimension_numbers<[1], [0], [0], [1], [0, 0, 1, 1], [], []>} : vector<16x512xbf16>, vector<512x128xbf16>, vector<16x128xf32> -> vector<16x128xf32>
    %15 = arith.addf %11, %14 : vector<16x128xf32>
    %c0_12 = arith.constant 0 : index
    %c0_13 = arith.constant 0 : index
    %16 = vector.load %arg5[%c0_12, %c0_13] : memref<16x128xf32, #tpu.memory_space<vmem>>, vector<16x128xf32>
    tpu.vector_store %arg5[%c0_12, %c0_13], %15 {strides = array<i32>} : memref<16x128xf32, #tpu.memory_space<vmem>>, vector<16x128xf32>,
    %c1_i32 = arith.constant 1 : i32
    %17 = arith.cmpi eq, %arg0, %c1_i32 : i32
    %18 = arith.extui %17 : i1 to i32
    %c0_i32_14 = arith.constant 0 : i32
    %19 = arith.cmpi ne, %18, %c0_i32_14 : i32
    scf.if %19 {
      %c0_15 = arith.constant 0 : index
      %c0_16 = arith.constant 0 : index
      %20 = vector.load %arg5[%c0_15, %c0_16] : memref<16x128xf32, #tpu.memory_space<vmem>>, vector<16x128xf32>
      %c0_17 = arith.constant 0 : index
      %c0_18 = arith.constant 0 : index
      %21 = vector.load %arg4[%c0_17, %c0_18] : memref<1x128xf32, #tpu.memory_space<vmem>>, vector<1x128xf32>
      %22 = vector.broadcast %21 : vector<1x128xf32> to vector<16x128xf32>
      %23 = arith.addf %20, %22 : vector<16x128xf32>
      %24 = arith.mulf %23, %23 : vector<16x128xf32>
      %cst_19 = arith.constant dense<0.000000e+00> : vector<16xf32>
      %25 = vector.multi_reduction <add>, %24, %cst_19 [1] : vector<16x128xf32> to vector<16xf32>
      %26 = vector.shape_cast %25 : vector<16xf32> to vector<16x1xf32>
      %cst_20 = arith.constant 1.000000e-24 : f32
      %27 = vector.broadcast %cst_20 : f32 to vector<16x1xf32>
      %28 = arith.maximumf %26, %27 : vector<16x1xf32>
      %29 = math.rsqrt %28 : vector<16x1xf32>
      %30 = vector.broadcast %29 : vector<16x1xf32> to vector<16x128xf32>
      %31 = arith.mulf %23, %30 : vector<16x128xf32>
      %c0_21 = arith.constant 0 : index
      %c0_22 = arith.constant 0 : index
      %32 = vector.load %arg5[%c0_21, %c0_22] : memref<16x128xf32, #tpu.memory_space<vmem>>, vector<16x128xf32>
      tpu.vector_store %arg5[%c0_21, %c0_22], %31 {strides = array<i32>} : memref<16x128xf32, #tpu.memory_space<vmem>>, vector<16x128xf32>,
    } else {
    }
    return
  }
  func.func @transform_0(%arg0: i32) -> (i32, i32) {
    %c0_i32 = arith.constant 0 : i32
    %c0_i32_0 = arith.constant 0 : i32
    return %c0_i32, %arg0 : i32, i32
  }
  func.func @transform_1(%arg0: i32) -> (i32, i32) {
    %c0_i32 = arith.constant 0 : i32
    %c0_i32_0 = arith.constant 0 : i32
    return %arg0, %c0_i32 : i32, i32
  }
  func.func @transform_2(%arg0: i32) -> (i32, i32) {
    %c0_i32 = arith.constant 0 : i32
    %c0_i32_0 = arith.constant 0 : i32
    return %arg0, %c0_i32 : i32, i32
  }
  func.func @transform_3(%arg0: i32) -> (i32, i32) {
    %c0_i32 = arith.constant 0 : i32
    %c0_i32_0 = arith.constant 0 : i32
    %c0_i32_1 = arith.constant 0 : i32
    return %c0_i32, %c0_i32_0 : i32, i32
  }
  func.func @transform_4(%arg0: i32) -> (i32, i32) {
    %c0_i32 = arith.constant 0 : i32
    %c0_i32_0 = arith.constant 0 : i32
    %c0_i32_1 = arith.constant 0 : i32
    return %c0_i32, %c0_i32_0 : i32, i32
  }
  func.func @transform_5(%arg0: i32) -> (i32, i32) {
    %c0_i32 = arith.constant 0 : i32
    %c0_i32_0 = arith.constant 0 : i32
    return %arg0, %c0_i32 : i32, i32
  }
}

module attributes {stable_mosaic.version = 11 : i64} {
  func.func @_fc_norm_kernel(%arg0: i32, %arg1: i32, %arg2: memref<16x512xbf16, #tpu.memory_space<vmem>>, %arg3: memref<512x128xbf16, #tpu.memory_space<vmem>>, %arg4: memref<1x128xf32, #tpu.memory_space<vmem>>, %arg5: memref<16x128xf32, #tpu.memory_space<vmem>>) attributes {dimension_semantics = [#tpu.dimension_semantics<parallel>, #tpu.dimension_semantics<arbitrary>], iteration_bounds = array<i64: 1, 2>, scalar_prefetch = 0 : i64, scratch_operands = 0 : i64, tpu.core_type = #tpu.core_type<tc>, window_params = [{transform_indices = @transform_0, window_bounds = array<i64: 16, 512>}, {transform_indices = @transform_1, window_bounds = array<i64: 512, 128>}, {pipeline_mode = #tpu.pipeline_mode<synchronous>, transform_indices = @transform_2, window_bounds = array<i64: 1, 128>}, {transform_indices = @transform_3, window_bounds = array<i64: 16, 128>}]} {
    %c0_i32 = arith.constant 0 : i32
    %0 = arith.cmpi eq, %arg1, %c0_i32 : i32
    %1 = arith.extui %0 : i1 to i32
    %c0_i32_0 = arith.constant 0 : i32
    %2 = arith.cmpi ne, %1, %c0_i32_0 : i32
    scf.if %2 {
      %cst_9 = arith.constant 0.000000e+00 : f32
      %12 = vector.broadcast %cst_9 : f32 to vector<16x128xf32>
      %c0_10 = arith.constant 0 : index
      %c0_11 = arith.constant 0 : index
      %13 = vector.load %arg5[%c0_10, %c0_11] : memref<16x128xf32, #tpu.memory_space<vmem>>, vector<16x128xf32>
      tpu.vector_store %arg5[%c0_10, %c0_11], %12 {strides = array<i32>} : memref<16x128xf32, #tpu.memory_space<vmem>>, vector<16x128xf32>,
    } else {
    }
    %c0 = arith.constant 0 : index
    %c0_1 = arith.constant 0 : index
    %3 = vector.load %arg5[%c0, %c0_1] : memref<16x128xf32, #tpu.memory_space<vmem>>, vector<16x128xf32>
    %c0_2 = arith.constant 0 : index
    %c0_3 = arith.constant 0 : index
    %4 = vector.load %arg2[%c0_2, %c0_3] : memref<16x512xbf16, #tpu.memory_space<vmem>>, vector<16x512xbf16>
    %c0_4 = arith.constant 0 : index
    %c0_5 = arith.constant 0 : index
    %5 = vector.load %arg3[%c0_4, %c0_5] : memref<512x128xbf16, #tpu.memory_space<vmem>>, vector<512x128xbf16>
    %cst = arith.constant dense<0.000000e+00> : vector<16x128xf32>
    %6 = tpu.matmul %4, %5, %cst {dimension_numbers = #tpu.dot_dimension_numbers<[1], [0], [0], [1], [0, 0, 1, 1], [], []>} : vector<16x512xbf16>, vector<512x128xbf16>, vector<16x128xf32> -> vector<16x128xf32>
    %7 = arith.addf %3, %6 : vector<16x128xf32>
    %c0_6 = arith.constant 0 : index
    %c0_7 = arith.constant 0 : index
    %8 = vector.load %arg5[%c0_6, %c0_7] : memref<16x128xf32, #tpu.memory_space<vmem>>, vector<16x128xf32>
    tpu.vector_store %arg5[%c0_6, %c0_7], %7 {strides = array<i32>} : memref<16x128xf32, #tpu.memory_space<vmem>>, vector<16x128xf32>,
    %c1_i32 = arith.constant 1 : i32
    %9 = arith.cmpi eq, %arg1, %c1_i32 : i32
    %10 = arith.extui %9 : i1 to i32
    %c0_i32_8 = arith.constant 0 : i32
    %11 = arith.cmpi ne, %10, %c0_i32_8 : i32
    scf.if %11 {
      %c0_9 = arith.constant 0 : index
      %c0_10 = arith.constant 0 : index
      %12 = vector.load %arg5[%c0_9, %c0_10] : memref<16x128xf32, #tpu.memory_space<vmem>>, vector<16x128xf32>
      %c0_11 = arith.constant 0 : index
      %c0_12 = arith.constant 0 : index
      %13 = vector.load %arg4[%c0_11, %c0_12] : memref<1x128xf32, #tpu.memory_space<vmem>>, vector<1x128xf32>
      %14 = vector.broadcast %13 : vector<1x128xf32> to vector<16x128xf32>
      %15 = arith.addf %12, %14 : vector<16x128xf32>
      %16 = arith.mulf %15, %15 : vector<16x128xf32>
      %cst_13 = arith.constant dense<0.000000e+00> : vector<16xf32>
      %17 = vector.multi_reduction <add>, %16, %cst_13 [1] : vector<16x128xf32> to vector<16xf32>
      %18 = vector.shape_cast %17 : vector<16xf32> to vector<16x1xf32>
      %cst_14 = arith.constant 1.000000e-24 : f32
      %19 = vector.broadcast %cst_14 : f32 to vector<16x1xf32>
      %20 = arith.maximumf %18, %19 : vector<16x1xf32>
      %21 = math.rsqrt %20 : vector<16x1xf32>
      %22 = vector.broadcast %21 : vector<16x1xf32> to vector<16x128xf32>
      %23 = arith.mulf %15, %22 : vector<16x128xf32>
      %c0_15 = arith.constant 0 : index
      %c0_16 = arith.constant 0 : index
      %24 = vector.load %arg5[%c0_15, %c0_16] : memref<16x128xf32, #tpu.memory_space<vmem>>, vector<16x128xf32>
      tpu.vector_store %arg5[%c0_15, %c0_16], %23 {strides = array<i32>} : memref<16x128xf32, #tpu.memory_space<vmem>>, vector<16x128xf32>,
    } else {
    }
    return
  }
  func.func @transform_0(%arg0: i32, %arg1: i32) -> (i32, i32) {
    %c0_i32 = arith.constant 0 : i32
    return %arg0, %arg1 : i32, i32
  }
  func.func @transform_1(%arg0: i32, %arg1: i32) -> (i32, i32) {
    %c0_i32 = arith.constant 0 : i32
    %c0_i32_0 = arith.constant 0 : i32
    return %arg1, %c0_i32 : i32, i32
  }
  func.func @transform_2(%arg0: i32, %arg1: i32) -> (i32, i32) {
    %c0_i32 = arith.constant 0 : i32
    %c0_i32_0 = arith.constant 0 : i32
    %c0_i32_1 = arith.constant 0 : i32
    return %c0_i32, %c0_i32_0 : i32, i32
  }
  func.func @transform_3(%arg0: i32, %arg1: i32) -> (i32, i32) {
    %c0_i32 = arith.constant 0 : i32
    %c0_i32_0 = arith.constant 0 : i32
    return %arg0, %c0_i32 : i32, i32
  }
}

module attributes {stable_mosaic.version = 11 : i64} {
  func.func @_moco_head_kernel(%arg0: i32, %arg1: i32, %arg2: memref<16x128xf32, #tpu.memory_space<vmem>>, %arg3: memref<16x128xf32, #tpu.memory_space<vmem>>, %arg4: memref<128x1024xbf16, #tpu.memory_space<vmem>>, %arg5: memref<16x1024xf32, #tpu.memory_space<vmem>>, %arg6: memref<16x128xf32, #tpu.memory_space<vmem>>) attributes {dimension_semantics = [#tpu.dimension_semantics<parallel>, #tpu.dimension_semantics<arbitrary>], iteration_bounds = array<i64: 1, 1>, scalar_prefetch = 0 : i64, scratch_operands = 0 : i64, tpu.core_type = #tpu.core_type<tc>, window_params = [{transform_indices = @transform_0, window_bounds = array<i64: 16, 128>}, {transform_indices = @transform_1, window_bounds = array<i64: 16, 128>}, {transform_indices = @transform_2, window_bounds = array<i64: 128, 1024>}, {transform_indices = @transform_3, window_bounds = array<i64: 16, 1024>}, {transform_indices = @transform_4, window_bounds = array<i64: 16, 128>}]} {
    %c0 = arith.constant 0 : index
    %c0_0 = arith.constant 0 : index
    %0 = vector.load %arg2[%c0, %c0_0] : memref<16x128xf32, #tpu.memory_space<vmem>>, vector<16x128xf32>
    %cst = arith.constant 1.000000e+02 : f32
    %1 = vector.broadcast %cst : f32 to vector<16x128xf32>
    %2 = arith.mulf %0, %1 : vector<16x128xf32>
    %3 = arith.truncf %2 : vector<16x128xf32> to vector<16x128xbf16>
    %c0_1 = arith.constant 0 : index
    %c0_2 = arith.constant 0 : index
    %4 = vector.load %arg4[%c0_1, %c0_2] : memref<128x1024xbf16, #tpu.memory_space<vmem>>, vector<128x1024xbf16>
    %cst_3 = arith.constant dense<0.000000e+00> : vector<16x1024xf32>
    %5 = tpu.matmul %3, %4, %cst_3 {dimension_numbers = #tpu.dot_dimension_numbers<[1], [0], [0], [1], [0, 0, 1, 1], [], []>} : vector<16x128xbf16>, vector<128x1024xbf16>, vector<16x1024xf32> -> vector<16x1024xf32>
    %c0_4 = arith.constant 0 : index
    %c0_5 = arith.constant 0 : index
    %6 = vector.load %arg5[%c0_4, %c0_5] : memref<16x1024xf32, #tpu.memory_space<vmem>>, vector<16x1024xf32>
    tpu.vector_store %arg5[%c0_4, %c0_5], %5 {strides = array<i32>} : memref<16x1024xf32, #tpu.memory_space<vmem>>, vector<16x1024xf32>,
    %c0_i32 = arith.constant 0 : i32
    %7 = arith.cmpi eq, %arg1, %c0_i32 : i32
    %8 = arith.extui %7 : i1 to i32
    %c0_i32_6 = arith.constant 0 : i32
    %9 = arith.cmpi ne, %8, %c0_i32_6 : i32
    scf.if %9 {
      %c0_7 = arith.constant 0 : index
      %c0_8 = arith.constant 0 : index
      %10 = vector.load %arg3[%c0_7, %c0_8] : memref<16x128xf32, #tpu.memory_space<vmem>>, vector<16x128xf32>
      %11 = arith.mulf %0, %10 : vector<16x128xf32>
      %cst_9 = arith.constant dense<0.000000e+00> : vector<16xf32>
      %12 = vector.multi_reduction <add>, %11, %cst_9 [1] : vector<16x128xf32> to vector<16xf32>
      %13 = vector.shape_cast %12 : vector<16xf32> to vector<16x1xf32>
      %cst_10 = arith.constant 1.000000e+02 : f32
      %14 = vector.broadcast %cst_10 : f32 to vector<16x1xf32>
      %15 = arith.mulf %13, %14 : vector<16x1xf32>
      %16 = vector.shape_cast %15 : vector<16x1xf32> to vector<16x1xf32>
      %17 = vector.broadcast %16 : vector<16x1xf32> to vector<16x128xf32>
      %c0_11 = arith.constant 0 : index
      %c0_12 = arith.constant 0 : index
      %18 = vector.load %arg6[%c0_11, %c0_12] : memref<16x128xf32, #tpu.memory_space<vmem>>, vector<16x128xf32>
      tpu.vector_store %arg6[%c0_11, %c0_12], %17 {strides = array<i32>} : memref<16x128xf32, #tpu.memory_space<vmem>>, vector<16x128xf32>,
    } else {
    }
    return
  }
  func.func @transform_0(%arg0: i32, %arg1: i32) -> (i32, i32) {
    %c0_i32 = arith.constant 0 : i32
    %c0_i32_0 = arith.constant 0 : i32
    return %arg0, %c0_i32 : i32, i32
  }
  func.func @transform_1(%arg0: i32, %arg1: i32) -> (i32, i32) {
    %c0_i32 = arith.constant 0 : i32
    %c0_i32_0 = arith.constant 0 : i32
    return %arg0, %c0_i32 : i32, i32
  }
  func.func @transform_2(%arg0: i32, %arg1: i32) -> (i32, i32) {
    %c0_i32 = arith.constant 0 : i32
    %c0_i32_0 = arith.constant 0 : i32
    return %c0_i32, %arg1 : i32, i32
  }
  func.func @transform_3(%arg0: i32, %arg1: i32) -> (i32, i32) {
    %c0_i32 = arith.constant 0 : i32
    return %arg0, %arg1 : i32, i32
  }
  func.func @transform_4(%arg0: i32, %arg1: i32) -> (i32, i32) {
    %c0_i32 = arith.constant 0 : i32
    %c0_i32_0 = arith.constant 0 : i32
    return %arg0, %c0_i32 : i32, i32
  }
}

</mosaic_0001>

<llo_original>
// kernel: moco_forward.4
$region0: #{moco_forward.4}
  #allocation0 [shape = 'u32[]', space=smem, size = 0x4, offset = 0x4, fixed_abs, tag = 'smem constant byte address 0x4 - core index']
  #allocation1 [shape = 'u32[144,128]{1,0:T(1,128)}', space=vmem, size = 0x12000, scoped, tag = 'internal scratch']
  %s0 = inlined_call_operand.vmem [shape: bf16[16,1024], index: 0, kind: input, shape index: {}]
  %s1 = inlined_call_operand.vmem [shape: f32[1024,128], index: 1, kind: input, shape index: {}]
  %s2 = inlined_call_operand.vmem [shape: f32[1024,128], index: 2, kind: input, shape index: {}]
  %s3 = inlined_call_operand.vmem [shape: f32[1,128], index: 3, kind: input, shape index: {}]
  %s4 = inlined_call_operand.vmem [shape: f32[16,128], index: 4, kind: output, shape index: {0}]
  %s5 = inlined_call_operand.hbm [shape: f32[1024,128], index: 5, kind: output, shape index: {1}]
  %6 = xla_tuple %s4, %s5
  %s7 = sld [smem:[#allocation0]]
  $region88: #{moco_forward.4} parent=0
    _
  %s9 = ssub.s32 1, %s7
  %s10 = scalar_select 0, %s9, %s7
  $region1: #{moco_forward.4} parent=0
    #allocation2 [shape = 'u8[32768]{0}', space=vmem, size = 0x8000, scoped, tag = 'input window, operand 0']
    #allocation3 [shape = 'u8[524288]{0}', space=vmem, size = 0x80000, scoped, tag = 'output window, operand 1']
    #allocation4 [shape = 's32[2]{0}', space=sflag, size = 0x8, scoped, tag = 'scoped memory for moco_forward.4']
    %11 = vsyncpa [#allocation4], 0
    %s12 = scalar_lea.sflag [#allocation4], 1
    %13 = vsyncpa %s12, 0
    loop: start=0, step=1, limit=4
    $region2: #{moco_forward.4} parent=1 // loop_pre_header
      _
    $region3: #{moco_forward.4} parent=1 // loop_header
      %s15 = sphi 0, %s19
      %p16 = scmp.ge.s32.totalorder %s15, 4
      %s25 = sphi 0, %s27
      %s28 = sphi 0, %s25
      %s29 = sphi 0, %s28
      %s45 = sphi 0, %s29
      %s51 = sphi 0, %s53
      %s54 = sphi 0, %s51
      %s55 = sphi 0, %s54
      %s71 = sphi 0, %s55
      %s77 = sphi 0, %s79
      %s80 = sphi 0, %s77
      %s81 = sphi 0, %s80
      %s97 = sphi 0, %s81
      %s101 = sphi 0, %s101
      %s103 = sphi 0, %s101
      %s104 = sphi 0, %s103
      %s118 = sphi 0, %s104
      %s122 = sphi 0, %s122
      %s124 = sphi 0, %s122
      %s125 = sphi 0, %s124
      %s139 = sphi 0, %s125
      %s145 = sphi 0, %s147
      %s148 = sphi 0, %s145
      %s149 = sphi 0, %s148
      %s165 = sphi 0, %s149
    $region4: #{moco_forward.4} parent=1 // loop_header_branch
      %18 = sbr.rel (%p16) target = $region8
    $region5: #{moco_forward.4} parent=1 // loop_body
      %s20 = ssub.s32 %s15, 1
      %s21 = ssub.s32 %s15, 2
      %s22 = sadd.s32 %s15, 1
      %s23 = ssub.s32 %s15, %s22
      %p24 = scmp.eq.s32.totalorder %s23, 0
      %s26 = sadd.s32 %s25, 1
      %s27 = scalar_select %p24, %s25, %s26
      %p30 = pneg %p24
      %p31 = scmp.eq.s32.totalorder %s15, 1
      %p32 = por %p30, %p31
      %p33 = scmp.ne.s32.totalorder %s25, %s28
      %p34 = scmp.eq.s32.totalorder %s15, 0
      %p35 = por %p33, %p34
      %p36 = scmp.ne.s32.totalorder %s25, %s28
      %p37 = scmp.eq.s32.totalorder %s20, 1
      %p38 = por %p36, %p37
      %p39 = scmp.ne.s32.totalorder %s28, %s29
      %p40 = scmp.eq.s32.totalorder %s20, 0
      %p41 = por %p39, %p40
      %p42 = scmp.ne.s32.totalorder %s28, %s29
      %p43 = scmp.eq.s32.totalorder %s21, 1
      %p44 = por %p42, %p43
      %p46 = scmp.ne.s32.totalorder %s29, %s45
      %p47 = scmp.eq.s32.totalorder %s21, 0
      %p48 = por %p46, %p47
      %s49 = ssub.s32 %s15, %s22
      %p50 = scmp.eq.s32.totalorder %s49, 0
      %s52 = sadd.s32 %s51, 1
      %s53 = scalar_select %p50, %s51, %s52
      %p56 = pneg %p50
      %p57 = scmp.eq.s32.totalorder %s15, 1
      %p58 = por %p56, %p57
      %p59 = scmp.ne.s32.totalorder %s51, %s54
      %p60 = scmp.eq.s32.totalorder %s15, 0
      %p61 = por %p59, %p60
      %p62 = scmp.ne.s32.totalorder %s51, %s54
      %p63 = scmp.eq.s32.totalorder %s20, 1
      %p64 = por %p62, %p63
      %p65 = scmp.ne.s32.totalorder %s54, %s55
      %p66 = scmp.eq.s32.totalorder %s20, 0
      %p67 = por %p65, %p66
      %p68 = scmp.ne.s32.totalorder %s54, %s55
      %p69 = scmp.eq.s32.totalorder %s21, 1
      %p70 = por %p68, %p69
      %p72 = scmp.ne.s32.totalorder %s55, %s71
      %p73 = scmp.eq.s32.totalorder %s21, 0
      %p74 = por %p72, %p73
      %s75 = ssub.s32 %s15, %s22
      %p76 = scmp.eq.s32.totalorder %s75, 0
      %s78 = sadd.s32 %s77, 1
      %s79 = scalar_select %p76, %s77, %s78
      %p82 = pneg %p76
      %p83 = scmp.eq.s32.totalorder %s15, 1
      %p84 = por %p82, %p83
      %p85 = scmp.ne.s32.totalorder %s77, %s80
      %p86 = scmp.eq.s32.totalorder %s15, 0
      %p87 = por %p85, %p86
      %p88 = scmp.ne.s32.totalorder %s77, %s80
      %p89 = scmp.eq.s32.totalorder %s20, 1
      %p90 = por %p88, %p89
      %p91 = scmp.ne.s32.totalorder %s80, %s81
      %p92 = scmp.eq.s32.totalorder %s20, 0
      %p93 = por %p91, %p92
      %p94 = scmp.ne.s32.totalorder %s80, %s81
      %p95 = scmp.eq.s32.totalorder %s21, 1
      %p96 = por %p94, %p95
      %p98 = scmp.ne.s32.totalorder %s81, %s97
      %p99 = scmp.eq.s32.totalorder %s21, 0
      %p100 = por %p98, %p99
      %s102 = sadd.s32 %s101, 1
      %p105 = scmp.eq.s32.totalorder %s15, 1
      %p106 = scmp.ne.s32.totalorder %s101, %s103
      %p107 = scmp.eq.s32.totalorder %s15, 0
      %p108 = por %p106, %p107
      %p109 = scmp.ne.s32.totalorder %s101, %s103
      %p110 = scmp.eq.s32.totalorder %s20, 1
      %p111 = por %p109, %p110
      %p112 = scmp.ne.s32.totalorder %s103, %s104
      %p113 = scmp.eq.s32.totalorder %s20, 0
      %p114 = por %p112, %p113
      %p115 = scmp.ne.s32.totalorder %s103, %s104
      %p116 = scmp.eq.s32.totalorder %s21, 1
      %p117 = por %p115, %p116
      %p119 = scmp.ne.s32.totalorder %s104, %s118
      %p120 = scmp.eq.s32.totalorder %s21, 0
      %p121 = por %p119, %p120
      %s123 = sadd.s32 %s122, 1
      %p126 = scmp.eq.s32.totalorder %s15, 1
      %p127 = scmp.ne.s32.totalorder %s122, %s124
      %p128 = scmp.eq.s32.totalorder %s15, 0
      %p129 = por %p127, %p128
      %p130 = scmp.ne.s32.totalorder %s122, %s124
      %p131 = scmp.eq.s32.totalorder %s20, 1
      %p132 = por %p130, %p131
      %p133 = scmp.ne.s32.totalorder %s124, %s125
      %p134 = scmp.eq.s32.totalorder %s20, 0
      %p135 = por %p133, %p134
      %p136 = scmp.ne.s32.totalorder %s124, %s125
      %p137 = scmp.eq.s32.totalorder %s21, 1
      %p138 = por %p136, %p137
      %p140 = scmp.ne.s32.totalorder %s125, %s139
      %p141 = scmp.eq.s32.totalorder %s21, 0
      %p142 = por %p140, %p141
      %s143 = ssub.s32 %s15, %s22
      %p144 = scmp.eq.s32.totalorder %s143, 0
      %s146 = sadd.s32 %s145, 1
      %s147 = scalar_select %p144, %s145, %s146
      %p150 = pneg %p144
      %p151 = scmp.eq.s32.totalorder %s15, 1
      %p152 = por %p150, %p151
      %p153 = scmp.ne.s32.totalorder %s145, %s148
      %p154 = scmp.eq.s32.totalorder %s15, 0
      %p155 = por %p153, %p154
      %p156 = scmp.ne.s32.totalorder %s145, %s148
      %p157 = scmp.eq.s32.totalorder %s20, 1
      %p158 = por %p156, %p157
      %p159 = scmp.ne.s32.totalorder %s148, %s149
      %p160 = scmp.eq.s32.totalorder %s20, 0
      %p161 = por %p159, %p160
      %p162 = scmp.ne.s32.totalorder %s148, %s149
      %p163 = scmp.eq.s32.totalorder %s21, 1
      %p164 = por %p162, %p163
      %p166 = scmp.ne.s32.totalorder %s149, %s165
      %p167 = scmp.eq.s32.totalorder %s21, 0
      %p168 = por %p166, %p167
      %p169 = scmp.le.s32.totalorder 1, %s15
      %p170 = scmp.lt.s32.totalorder %s15, 3
      %p171 = pnand %p169, %p170
      %p172 = pneg %p171
      // Predicated region
      $region9: #{moco_forward.4} parent=5 // pred_check
        _
      $region10: #{moco_forward.4} parent=5 // pred_check_branch
        %174 = sbr.rel (%p171) target = $region12
      $region11: #{moco_forward.4} parent=5 // pred_region
        %s175 = ssub.s32 %s15, 1
        // Predicated region
        $region13: #{moco_forward.4} parent=11 // pred_check
          %p176 = pneg %p114
        $region14: #{moco_forward.4} parent=11 // pred_check_branch
          %178 = sbr.rel (%p176) target = $region16
        $region15: #{moco_forward.4} parent=11 // pred_region
          _
        $region16: #{moco_forward.4} parent=11 // pred_fallthru
          _
      $region12: #{moco_forward.4} parent=5 // pred_fallthru
        _
      %p179 = scmp.lt.s32.totalorder %s15, 2
      // Predicated region
      $region17: #{moco_forward.4} parent=5 // pred_check
        %p180 = pneg %p179
      $region18: #{moco_forward.4} parent=5 // pred_check_branch
        %182 = sbr.rel (%p180) target = $region20
      $region19: #{moco_forward.4} parent=5 // pred_region
        // Predicated region
        $region21: #{moco_forward.4} parent=19 // pred_check
          %p183 = pneg %p35
        $region22: #{moco_forward.4} parent=19 // pred_check_branch
          %185 = sbr.rel (%p183) target = $region24
        $region23: #{moco_forward.4} parent=19 // pred_region
          %s186 = sand.u32 %s25, 1
          %s187 = sand.u32 %s25, 1
          %s188 = smul.addr %s187, 32
          %s189 = scalar_lea.vmem [#allocation2], %s188
          %s190 = smul.u32 4, %s15
          %s191 = smul.addr %s190, 4
          %s192 = scalar_lea.vmem %s0, %s191
          // Predicated region
          $region25: #{moco_forward.4} parent=23 // pred_check
            _
          $region26: #{moco_forward.4} parent=23 // pred_check_branch
            %194 = sbr.rel (0) target = $region28
          $region27: #{moco_forward.4} parent=23 // pred_region
            // Predicated region
            $region29: #{moco_forward.4} parent=27 // pred_check
              _
            $region30: #{moco_forward.4} parent=27 // pred_check_branch
              %196 = sbr.rel (0) target = $region32
            $region31: #{moco_forward.4} parent=27 // pred_region
              loop: start=0, step=1, limit=1
              $region33: #{moco_forward.4} parent=31 // loop_pre_header
                _
              $region34: #{moco_forward.4} parent=31 // loop_header
                %s198 = sphi 0, %s202
                %p199 = scmp.ge.s32.totalorder %s198, 1
                %s203 = sphi %s192, %s192
                %s204 = sphi %s189, %s189
              $region35: #{moco_forward.4} parent=31 // loop_header_branch
                %201 = sbr.rel (%p199) target = $region39
              $region36: #{moco_forward.4} parent=31 // loop_body
                %v205 = vld [vmem:[%s203] sm:$0xff]
                %206 = vst [vmem:[%s204] sm:$0xff] %v205
                %v207 = vld [vmem:[%s203 + $0x8] sm:$0xff]
                %208 = vst [vmem:[%s204 + $0x8] sm:$0xff] %v207
                %v209 = vld [vmem:[%s203 + $0x20] sm:$0xff]
                %210 = vst [vmem:[%s204 + $0x10] sm:$0xff] %v209
                %v211 = vld [vmem:[%s203 + $0x28] sm:$0xff]
                %212 = vst [vmem:[%s204 + $0x18] sm:$0xff] %v211
              $region37: #{moco_forward.4} parent=31 // loop_footer
                %s202 = sadd.s32 1, %s198
              $region38: #{moco_forward.4} parent=31 // loop_footer_branch
                %197 = sbr.rel target = $region34
              $region39: #{moco_forward.4} parent=31 // loop_exit
                _
            $region32: #{moco_forward.4} parent=27 // pred_fallthru
              _
            // Predicated region
            $region40: #{moco_forward.4} parent=27 // pred_check
              _
            $region41: #{moco_forward.4} parent=27 // pred_check_branch
              %214 = sbr.rel target = $region43
            $region42: #{moco_forward.4} parent=27 // pred_region
              _
            $region43: #{moco_forward.4} parent=27 // pred_fallthru
              _
          $region28: #{moco_forward.4} parent=23 // pred_fallthru
            _
          %215 = vnop
        $region24: #{moco_forward.4} parent=19 // pred_fallthru
          _
        // Predicated region
        $region44: #{moco_forward.4} parent=19 // pred_check
          %p216 = pneg %p61
        $region45: #{moco_forward.4} parent=19 // pred_check_branch
          %218 = sbr.rel (%p216) target = $region47
        $region46: #{moco_forward.4} parent=19 // pred_region
          %s219 = smul.u32 64, %s15
          %p220 = scmp.lt.s32.totalorder %s219, 127
          %s221 = scalar_select %p220, %s219, 127
          %s222 = smul.addr %s221, 8
          %s223 = scalar_lea.vmem %s1, %s222
          %s224 = smul.u32 64, %s15
        $region47: #{moco_forward.4} parent=19 // pred_fallthru
          _
        // Predicated region
        $region48: #{moco_forward.4} parent=19 // pred_check
          %p225 = pneg %p87
        $region49: #{moco_forward.4} parent=19 // pred_check_branch
          %227 = sbr.rel (%p225) target = $region51
        $region50: #{moco_forward.4} parent=19 // pred_region
          %s228 = smul.u32 64, %s15
          %p229 = scmp.lt.s32.totalorder %s228, 127
          %s230 = scalar_select %p229, %s228, 127
          %s231 = smul.addr %s230, 8
          %s232 = scalar_lea.vmem %s2, %s231
          %s233 = smul.u32 64, %s15
        $region51: #{moco_forward.4} parent=19 // pred_fallthru
          _
      $region20: #{moco_forward.4} parent=5 // pred_fallthru
        _
      %p234 = scmp.le.s32.totalorder 1, %s15
      %p235 = scmp.lt.s32.totalorder %s15, 3
      %p236 = pnand %p234, %p235
      %p237 = pneg %p236
      // Predicated region
      $region52: #{moco_forward.4} parent=5 // pred_check
        _
      $region53: #{moco_forward.4} parent=5 // pred_check_branch
        %239 = sbr.rel (%p236) target = $region55
      $region54: #{moco_forward.4} parent=5 // pred_region
        %s240 = ssub.s32 %s15, 1
        %s241 = sand.u32 %s28, 1
        %s242 = sand.u32 %s28, 1
        %s243 = smul.addr %s242, 32
        %s244 = scalar_lea.vmem [#allocation2], %s243
        // Predicated region
        $region56: #{moco_forward.4} parent=54 // pred_check
          %p245 = pneg %p41
        $region57: #{moco_forward.4} parent=54 // pred_check_branch
          %247 = sbr.rel (%p245) target = $region59
        $region58: #{moco_forward.4} parent=54 // pred_region
          _
        $region59: #{moco_forward.4} parent=54 // pred_fallthru
          _
        %s248 = sand.u32 %s28, 1
        %s249 = sand.u32 %s28, 1
        %s250 = smul.addr %s249, 32
        %s251 = scalar_lea.vmem [#allocation2], %s250
        %p252 = pneg %p41
        %p253 = pneg %p38
        %s254 = smul.u32 64, %s20
        %p255 = scmp.lt.s32.totalorder %s254, 127
        %s256 = scalar_select %p255, %s254, 127
        %s257 = smul.addr %s256, 8
        %s258 = scalar_lea.vmem %s1, %s257
        %p259 = pneg %p67
        %p260 = pneg %p64
        %s261 = smul.u32 64, %s20
        %p262 = scmp.lt.s32.totalorder %s261, 127
        %s263 = scalar_select %p262, %s261, 127
        %s264 = smul.addr %s263, 8
        %s265 = scalar_lea.vmem %s2, %s264
        %p266 = pneg %p93
        %p267 = pneg %p90
        %p268 = pneg %p114
        %p269 = pneg %p111
        %p270 = pneg %p135
        %p271 = pneg %p132
        %p272 = pneg %p161
        %p273 = pneg %p158
        %s274 = sand.u32 %s148, 1
        %s275 = scalar_lea.sflag [#allocation4], %s274
        %s276 = sand.u32 %s148, 1
        %s277 = smul.addr %s276, 512
        %s278 = scalar_lea.vmem [#allocation3], %s277
        %s279 = smul.u32 4, %s20
        %s280 = smul.u32 64, %s20
        %p281 = scmp.lt.s32.totalorder %s280, 127
        %s282 = scalar_select %p281, %s280, 127
        %s283 = smul.addr %s282, 8
        %s284 = scalar_lea.vmem %s1, %s283
        %s285 = smul.u32 64, %s20
        %s286 = smul.u32 64, %s20
        %p287 = scmp.lt.s32.totalorder %s286, 127
        %s288 = scalar_select %p287, %s286, 127
        %s289 = smul.addr %s288, 8
        %s290 = scalar_lea.vmem %s2, %s289
        %s291 = smul.u32 64, %s20
        %s292 = smul.u32 64, %s20
        %p294 = scmp.eq.s32.totalorder %s20, 0
        // Predicated region
        $region60: #{moco_forward.4} parent=54 // pred_check
          %p295 = pneg %p294
        $region61: #{moco_forward.4} parent=54 // pred_check_branch
          %297 = sbr.rel (%p295) target = $region63
        $region62: #{moco_forward.4} parent=54 // pred_region
          %298 = vst [vmem:[%s4] sm:$0xff] 0.0
          %299 = vst [vmem:[%s4 + $0x8] sm:$0xff] 0.0
        $region63: #{moco_forward.4} parent=54 // pred_fallthru
          _
        %v300 = vld [vmem:[%s284] sm:$0xff]
        %v301 = vld [vmem:[%s284 + $0x8] sm:$0xff]
        %v302 = vld [vmem:[%s284 + $0x10] sm:$0xff]
        %v303 = vld [vmem:[%s284 + $0x18] sm:$0xff]
        %v304 = vld [vmem:[%s284 + $0x20] sm:$0xff]
        %v305 = vld [vmem:[%s284 + $0x28] sm:$0xff]
        %v306 = vld [vmem:[%s284 + $0x30] sm:$0xff]
        %v307 = vld [vmem:[%s284 + $0x38] sm:$0xff]
        %v308 = vld [vmem:[%s284 + $0x40] sm:$0xff]
        %v309 = vld [vmem:[%s284 + $0x48] sm:$0xff]
        %v310 = vld [vmem:[%s284 + $0x50] sm:$0xff]
        %v311 = vld [vmem:[%s284 + $0x58] sm:$0xff]
        %v312 = vld [vmem:[%s284 + $0x60] sm:$0xff]
        %v313 = vld [vmem:[%s284 + $0x68] sm:$0xff]
        %v314 = vld [vmem:[%s284 + $0x70] sm:$0xff]
        %v315 = vld [vmem:[%s284 + $0x78] sm:$0xff]
        %v316 = vld [vmem:[%s284 + $0x80] sm:$0xff]
        %v317 = vld [vmem:[%s284 + $0x88] sm:$0xff]
        %v318 = vld [vmem:[%s284 + $0x90] sm:$0xff]
        %v319 = vld [vmem:[%s284 + $0x98] sm:$0xff]
        %v320 = vld [vmem:[%s284 + $0xa0] sm:$0xff]
        %v321 = vld [vmem:[%s284 + $0xa8] sm:$0xff]
        %v322 = vld [vmem:[%s284 + $0xb0] sm:$0xff]
        %v323 = vld [vmem:[%s284 + $0xb8] sm:$0xff]
        %v324 = vld [vmem:[%s284 + $0xc0] sm:$0xff]
        %v325 = vld [vmem:[%s284 + $0xc8] sm:$0xff]
        %v326 = vld [vmem:[%s284 + $0xd0] sm:$0xff]
        %v327 = vld [vmem:[%s284 + $0xd8] sm:$0xff]
        %v328 = vld [vmem:[%s284 + $0xe0] sm:$0xff]
        %v329 = vld [vmem:[%s284 + $0xe8] sm:$0xff]
        %v330 = vld [vmem:[%s284 + $0xf0] sm:$0xff]
        %v331 = vld [vmem:[%s284 + $0xf8] sm:$0xff]
        %v332 = vld [vmem:[%s284 + $0x100] sm:$0xff]
        %v333 = vld [vmem:[%s284 + $0x108] sm:$0xff]
        %v334 = vld [vmem:[%s284 + $0x110] sm:$0xff]
        %v335 = vld [vmem:[%s284 + $0x118] sm:$0xff]
        %v336 = vld [vmem:[%s284 + $0x120] sm:$0xff]
        %v337 = vld [vmem:[%s284 + $0x128] sm:$0xff]
        %v338 = vld [vmem:[%s284 + $0x130] sm:$0xff]
        %v339 = vld [vmem:[%s284 + $0x138] sm:$0xff]
        %v340 = vld [vmem:[%s284 + $0x140] sm:$0xff]
        %v341 = vld [vmem:[%s284 + $0x148] sm:$0xff]
        %v342 = vld [vmem:[%s284 + $0x150] sm:$0xff]
        %v343 = vld [vmem:[%s284 + $0x158] sm:$0xff]
        %v344 = vld [vmem:[%s284 + $0x160] sm:$0xff]
        %v345 = vld [vmem:[%s284 + $0x168] sm:$0xff]
        %v346 = vld [vmem:[%s284 + $0x170] sm:$0xff]
        %v347 = vld [vmem:[%s284 + $0x178] sm:$0xff]
        %v348 = vld [vmem:[%s284 + $0x180] sm:$0xff]
        %v349 = vld [vmem:[%s284 + $0x188] sm:$0xff]
        %v350 = vld [vmem:[%s284 + $0x190] sm:$0xff]
        %v351 = vld [vmem:[%s284 + $0x198] sm:$0xff]
        %v352 = vld [vmem:[%s284 + $0x1a0] sm:$0xff]
        %v353 = vld [vmem:[%s284 + $0x1a8] sm:$0xff]
        %v354 = vld [vmem:[%s284 + $0x1b0] sm:$0xff]
        %v355 = vld [vmem:[%s284 + $0x1b8] sm:$0xff]
        %v356 = vld [vmem:[%s284 + $0x1c0] sm:$0xff]
        %v357 = vld [vmem:[%s284 + $0x1c8] sm:$0xff]
        %v358 = vld [vmem:[%s284 + $0x1d0] sm:$0xff]
        %v359 = vld [vmem:[%s284 + $0x1d8] sm:$0xff]
        %v360 = vld [vmem:[%s284 + $0x1e0] sm:$0xff]
        %v361 = vld [vmem:[%s284 + $0x1e8] sm:$0xff]
        %v362 = vld [vmem:[%s284 + $0x1f0] sm:$0xff]
        %v363 = vld [vmem:[%s284 + $0x1f8] sm:$0xff]
        %v364 = vmul.f32 %v300, 0.999
        %v365 = vmul.f32 %v301, 0.999
        %v366 = vmul.f32 %v302, 0.999
        %v367 = vmul.f32 %v303, 0.999
        %v368 = vmul.f32 %v304, 0.999
        %v369 = vmul.f32 %v305, 0.999
        %v370 = vmul.f32 %v306, 0.999
        %v371 = vmul.f32 %v307, 0.999
        %v372 = vmul.f32 %v308, 0.999
        %v373 = vmul.f32 %v309, 0.999
        %v374 = vmul.f32 %v310, 0.999
        %v375 = vmul.f32 %v311, 0.999
        %v376 = vmul.f32 %v312, 0.999
        %v377 = vmul.f32 %v313, 0.999
        %v378 = vmul.f32 %v314, 0.999
        %v379 = vmul.f32 %v315, 0.999
        %v380 = vmul.f32 %v316, 0.999
        %v381 = vmul.f32 %v317, 0.999
        %v382 = vmul.f32 %v318, 0.999
        %v383 = vmul.f32 %v319, 0.999
        %v384 = vmul.f32 %v320, 0.999
        %v385 = vmul.f32 %v321, 0.999
        %v386 = vmul.f32 %v322, 0.999
        %v387 = vmul.f32 %v323, 0.999
        %v388 = vmul.f32 %v324, 0.999
        %v389 = vmul.f32 %v325, 0.999
        %v390 = vmul.f32 %v326, 0.999
        %v391 = vmul.f32 %v327, 0.999
        %v392 = vmul.f32 %v328, 0.999
        %v393 = vmul.f32 %v329, 0.999
        %v394 = vmul.f32 %v330, 0.999
        %v395 = vmul.f32 %v331, 0.999
        %v396 = vmul.f32 %v332, 0.999
        %v397 = vmul.f32 %v333, 0.999
        %v398 = vmul.f32 %v334, 0.999
        %v399 = vmul.f32 %v335, 0.999
        %v400 = vmul.f32 %v336, 0.999
        %v401 = vmul.f32 %v337, 0.999
        %v402 = vmul.f32 %v338, 0.999
        %v403 = vmul.f32 %v339, 0.999
        %v404 = vmul.f32 %v340, 0.999
        %v405 = vmul.f32 %v341, 0.999
        %v406 = vmul.f32 %v342, 0.999
        %v407 = vmul.f32 %v343, 0.999
        %v408 = vmul.f32 %v344, 0.999
        %v409 = vmul.f32 %v345, 0.999
        %v410 = vmul.f32 %v346, 0.999
        %v411 = vmul.f32 %v347, 0.999
        %v412 = vmul.f32 %v348, 0.999
        %v413 = vmul.f32 %v349, 0.999
        %v414 = vmul.f32 %v350, 0.999
        %v415 = vmul.f32 %v351, 0.999
        %v416 = vmul.f32 %v352, 0.999
        %v417 = vmul.f32 %v353, 0.999
        %v418 = vmul.f32 %v354, 0.999
        %v419 = vmul.f32 %v355, 0.999
        %v420 = vmul.f32 %v356, 0.999
        %v421 = vmul.f32 %v357, 0.999
        %v422 = vmul.f32 %v358, 0.999
        %v423 = vmul.f32 %v359, 0.999
        %v424 = vmul.f32 %v360, 0.999
        %v425 = vmul.f32 %v361, 0.999
        %v426 = vmul.f32 %v362, 0.999
        %v427 = vmul.f32 %v363, 0.999
        %v428 = vld [vmem:[%s290] sm:$0xff]
        %v429 = vld [vmem:[%s290 + $0x8] sm:$0xff]
        %v430 = vld [vmem:[%s290 + $0x10] sm:$0xff]
        %v431 = vld [vmem:[%s290 + $0x18] sm:$0xff]
        %v432 = vld [vmem:[%s290 + $0x20] sm:$0xff]
        %v433 = vld [vmem:[%s290 + $0x28] sm:$0xff]
        %v434 = vld [vmem:[%s290 + $0x30] sm:$0xff]
        %v435 = vld [vmem:[%s290 + $0x38] sm:$0xff]
        %v436 = vld [vmem:[%s290 + $0x40] sm:$0xff]
        %v437 = vld [vmem:[%s290 + $0x48] sm:$0xff]
        %v438 = vld [vmem:[%s290 + $0x50] sm:$0xff]
        %v439 = vld [vmem:[%s290 + $0x58] sm:$0xff]
        %v440 = vld [vmem:[%s290 + $0x60] sm:$0xff]
        %v441 = vld [vmem:[%s290 + $0x68] sm:$0xff]
        %v442 = vld [vmem:[%s290 + $0x70] sm:$0xff]
        %v443 = vld [vmem:[%s290 + $0x78] sm:$0xff]
        %v444 = vld [vmem:[%s290 + $0x80] sm:$0xff]
        %v445 = vld [vmem:[%s290 + $0x88] sm:$0xff]
        %v446 = vld [vmem:[%s290 + $0x90] sm:$0xff]
        %v447 = vld [vmem:[%s290 + $0x98] sm:$0xff]
        %v448 = vld [vmem:[%s290 + $0xa0] sm:$0xff]
        %v449 = vld [vmem:[%s290 + $0xa8] sm:$0xff]
        %v450 = vld [vmem:[%s290 + $0xb0] sm:$0xff]
        %v451 = vld [vmem:[%s290 + $0xb8] sm:$0xff]
        %v452 = vld [vmem:[%s290 + $0xc0] sm:$0xff]
        %v453 = vld [vmem:[%s290 + $0xc8] sm:$0xff]
        %v454 = vld [vmem:[%s290 + $0xd0] sm:$0xff]
        %v455 = vld [vmem:[%s290 + $0xd8] sm:$0xff]
        %v456 = vld [vmem:[%s290 + $0xe0] sm:$0xff]
        %v457 = vld [vmem:[%s290 + $0xe8] sm:$0xff]
        %v458 = vld [vmem:[%s290 + $0xf0] sm:$0xff]
        %v459 = vld [vmem:[%s290 + $0xf8] sm:$0xff]
        %v460 = vld [vmem:[%s290 + $0x100] sm:$0xff]
        %v461 = vld [vmem:[%s290 + $0x108] sm:$0xff]
        %v462 = vld [vmem:[%s290 + $0x110] sm:$0xff]
        %v463 = vld [vmem:[%s290 + $0x118] sm:$0xff]
        %v464 = vld [vmem:[%s290 + $0x120] sm:$0xff]
        %v465 = vld [vmem:[%s290 + $0x128] sm:$0xff]
        %v466 = vld [vmem:[%s290 + $0x130] sm:$0xff]
        %v467 = vld [vmem:[%s290 + $0x138] sm:$0xff]
        %v468 = vld [vmem:[%s290 + $0x140] sm:$0xff]
        %v469 = vld [vmem:[%s290 + $0x148] sm:$0xff]
        %v470 = vld [vmem:[%s290 + $0x150] sm:$0xff]
        %v471 = vld [vmem:[%s290 + $0x158] sm:$0xff]
        %v472 = vld [vmem:[%s290 + $0x160] sm:$0xff]
        %v473 = vld [vmem:[%s290 + $0x168] sm:$0xff]
        %v474 = vld [vmem:[%s290 + $0x170] sm:$0xff]
        %v475 = vld [vmem:[%s290 + $0x178] sm:$0xff]
        %v476 = vld [vmem:[%s290 + $0x180] sm:$0xff]
        %v477 = vld [vmem:[%s290 + $0x188] sm:$0xff]
        %v478 = vld [vmem:[%s290 + $0x190] sm:$0xff]
        %v479 = vld [vmem:[%s290 + $0x198] sm:$0xff]
        %v480 = vld [vmem:[%s290 + $0x1a0] sm:$0xff]
        %v481 = vld [vmem:[%s290 + $0x1a8] sm:$0xff]
        %v482 = vld [vmem:[%s290 + $0x1b0] sm:$0xff]
        %v483 = vld [vmem:[%s290 + $0x1b8] sm:$0xff]
        %v484 = vld [vmem:[%s290 + $0x1c0] sm:$0xff]
        %v485 = vld [vmem:[%s290 + $0x1c8] sm:$0xff]
        %v486 = vld [vmem:[%s290 + $0x1d0] sm:$0xff]
        %v487 = vld [vmem:[%s290 + $0x1d8] sm:$0xff]
        %v488 = vld [vmem:[%s290 + $0x1e0] sm:$0xff]
        %v489 = vld [vmem:[%s290 + $0x1e8] sm:$0xff]
        %v490 = vld [vmem:[%s290 + $0x1f0] sm:$0xff]
        %v491 = vld [vmem:[%s290 + $0x1f8] sm:$0xff]
        %v492 = vmul.f32 %v428, 0.001
        %v493 = vmul.f32 %v429, 0.001
        %v494 = vmul.f32 %v430, 0.001
        %v495 = vmul.f32 %v431, 0.001
        %v496 = vmul.f32 %v432, 0.001
        %v497 = vmul.f32 %v433, 0.001
        %v498 = vmul.f32 %v434, 0.001
        %v499 = vmul.f32 %v435, 0.001
        %v500 = vmul.f32 %v436, 0.001
        %v501 = vmul.f32 %v437, 0.001
        %v502 = vmul.f32 %v438, 0.001
        %v503 = vmul.f32 %v439, 0.001
        %v504 = vmul.f32 %v440, 0.001
        %v505 = vmul.f32 %v441, 0.001
        %v506 = vmul.f32 %v442, 0.001
        %v507 = vmul.f32 %v443, 0.001
        %v508 = vmul.f32 %v444, 0.001
        %v509 = vmul.f32 %v445, 0.001
        %v510 = vmul.f32 %v446, 0.001
        %v511 = vmul.f32 %v447, 0.001
        %v512 = vmul.f32 %v448, 0.001
        %v513 = vmul.f32 %v449, 0.001
        %v514 = vmul.f32 %v450, 0.001
        %v515 = vmul.f32 %v451, 0.001
        %v516 = vmul.f32 %v452, 0.001
        %v517 = vmul.f32 %v453, 0.001
        %v518 = vmul.f32 %v454, 0.001
        %v519 = vmul.f32 %v455, 0.001
        %v520 = vmul.f32 %v456, 0.001
        %v521 = vmul.f32 %v457, 0.001
        %v522 = vmul.f32 %v458, 0.001
        %v523 = vmul.f32 %v459, 0.001
        %v524 = vmul.f32 %v460, 0.001
        %v525 = vmul.f32 %v461, 0.001
        %v526 = vmul.f32 %v462, 0.001
        %v527 = vmul.f32 %v463, 0.001
        %v528 = vmul.f32 %v464, 0.001
        %v529 = vmul.f32 %v465, 0.001
        %v530 = vmul.f32 %v466, 0.001
        %v531 = vmul.f32 %v467, 0.001
        %v532 = vmul.f32 %v468, 0.001
        %v533 = vmul.f32 %v469, 0.001
        %v534 = vmul.f32 %v470, 0.001
        %v535 = vmul.f32 %v471, 0.001
        %v536 = vmul.f32 %v472, 0.001
        %v537 = vmul.f32 %v473, 0.001
        %v538 = vmul.f32 %v474, 0.001
        %v539 = vmul.f32 %v475, 0.001
        %v540 = vmul.f32 %v476, 0.001
        %v541 = vmul.f32 %v477, 0.001
        %v542 = vmul.f32 %v478, 0.001
        %v543 = vmul.f32 %v479, 0.001
        %v544 = vmul.f32 %v480, 0.001
        %v545 = vmul.f32 %v481, 0.001
        %v546 = vmul.f32 %v482, 0.001
        %v547 = vmul.f32 %v483, 0.001
        %v548 = vmul.f32 %v484, 0.001
        %v549 = vmul.f32 %v485, 0.001
        %v550 = vmul.f32 %v486, 0.001
        %v551 = vmul.f32 %v487, 0.001
        %v552 = vmul.f32 %v488, 0.001
        %v553 = vmul.f32 %v489, 0.001
        %v554 = vmul.f32 %v490, 0.001
        %v555 = vmul.f32 %v491, 0.001
        %v556 = vadd.f32 %v364, %v492
        %v557 = vadd.f32 %v365, %v493
        %v558 = vadd.f32 %v366, %v494
        %v559 = vadd.f32 %v367, %v495
        %v560 = vadd.f32 %v368, %v496
        %v561 = vadd.f32 %v369, %v497
        %v562 = vadd.f32 %v370, %v498
        %v563 = vadd.f32 %v371, %v499
        %v564 = vadd.f32 %v372, %v500
        %v565 = vadd.f32 %v373, %v501
        %v566 = vadd.f32 %v374, %v502
        %v567 = vadd.f32 %v375, %v503
        %v568 = vadd.f32 %v376, %v504
        %v569 = vadd.f32 %v377, %v505
        %v570 = vadd.f32 %v378, %v506
        %v571 = vadd.f32 %v379, %v507
        %v572 = vadd.f32 %v380, %v508
        %v573 = vadd.f32 %v381, %v509
        %v574 = vadd.f32 %v382, %v510
        %v575 = vadd.f32 %v383, %v511
        %v576 = vadd.f32 %v384, %v512
        %v577 = vadd.f32 %v385, %v513
        %v578 = vadd.f32 %v386, %v514
        %v579 = vadd.f32 %v387, %v515
        %v580 = vadd.f32 %v388, %v516
        %v581 = vadd.f32 %v389, %v517
        %v582 = vadd.f32 %v390, %v518
        %v583 = vadd.f32 %v391, %v519
        %v584 = vadd.f32 %v392, %v520
        %v585 = vadd.f32 %v393, %v521
        %v586 = vadd.f32 %v394, %v522
        %v587 = vadd.f32 %v395, %v523
        %v588 = vadd.f32 %v396, %v524
        %v589 = vadd.f32 %v397, %v525
        %v590 = vadd.f32 %v398, %v526
        %v591 = vadd.f32 %v399, %v527
        %v592 = vadd.f32 %v400, %v528
        %v593 = vadd.f32 %v401, %v529
        %v594 = vadd.f32 %v402, %v530
        %v595 = vadd.f32 %v403, %v531
        %v596 = vadd.f32 %v404, %v532
        %v597 = vadd.f32 %v405, %v533
        %v598 = vadd.f32 %v406, %v534
        %v599 = vadd.f32 %v407, %v535
        %v600 = vadd.f32 %v408, %v536
        %v601 = vadd.f32 %v409, %v537
        %v602 = vadd.f32 %v410, %v538
        %v603 = vadd.f32 %v411, %v539
        %v604 = vadd.f32 %v412, %v540
        %v605 = vadd.f32 %v413, %v541
        %v606 = vadd.f32 %v414, %v542
        %v607 = vadd.f32 %v415, %v543
        %v608 = vadd.f32 %v416, %v544
        %v609 = vadd.f32 %v417, %v545
        %v610 = vadd.f32 %v418, %v546
        %v611 = vadd.f32 %v419, %v547
        %v612 = vadd.f32 %v420, %v548
        %v613 = vadd.f32 %v421, %v549
        %v614 = vadd.f32 %v422, %v550
        %v615 = vadd.f32 %v423, %v551
        %v616 = vadd.f32 %v424, %v552
        %v617 = vadd.f32 %v425, %v553
        %v618 = vadd.f32 %v426, %v554
        %v619 = vadd.f32 %v427, %v555
        %620 = vst [vmem:[%s278] sm:$0xff] %v556
        %621 = vst [vmem:[%s278 + $0x8] sm:$0xff] %v557
        %622 = vst [vmem:[%s278 + $0x10] sm:$0xff] %v558
        %623 = vst [vmem:[%s278 + $0x18] sm:$0xff] %v559
        %624 = vst [vmem:[%s278 + $0x20] sm:$0xff] %v560
        %625 = vst [vmem:[%s278 + $0x28] sm:$0xff] %v561
        %626 = vst [vmem:[%s278 + $0x30] sm:$0xff] %v562
        %627 = vst [vmem:[%s278 + $0x38] sm:$0xff] %v563
        %628 = vst [vmem:[%s278 + $0x40] sm:$0xff] %v564
        %629 = vst [vmem:[%s278 + $0x48] sm:$0xff] %v565
        %630 = vst [vmem:[%s278 + $0x50] sm:$0xff] %v566
        %631 = vst [vmem:[%s278 + $0x58] sm:$0xff] %v567
        %632 = vst [vmem:[%s278 + $0x60] sm:$0xff] %v568
        %633 = vst [vmem:[%s278 + $0x68] sm:$0xff] %v569
        %634 = vst [vmem:[%s278 + $0x70] sm:$0xff] %v570
        %635 = vst [vmem:[%s278 + $0x78] sm:$0xff] %v571
        %636 = vst [vmem:[%s278 + $0x80] sm:$0xff] %v572
        %637 = vst [vmem:[%s278 + $0x88] sm:$0xff] %v573
        %638 = vst [vmem:[%s278 + $0x90] sm:$0xff] %v574
        %639 = vst [vmem:[%s278 + $0x98] sm:$0xff] %v575
        %640 = vst [vmem:[%s278 + $0xa0] sm:$0xff] %v576
        %641 = vst [vmem:[%s278 + $0xa8] sm:$0xff] %v577
        %642 = vst [vmem:[%s278 + $0xb0] sm:$0xff] %v578
        %643 = vst [vmem:[%s278 + $0xb8] sm:$0xff] %v579
        %644 = vst [vmem:[%s278 + $0xc0] sm:$0xff] %v580
        %645 = vst [vmem:[%s278 + $0xc8] sm:$0xff] %v581
        %646 = vst [vmem:[%s278 + $0xd0] sm:$0xff] %v582
        %647 = vst [vmem:[%s278 + $0xd8] sm:$0xff] %v583
        %648 = vst [vmem:[%s278 + $0xe0] sm:$0xff] %v584
        %649 = vst [vmem:[%s278 + $0xe8] sm:$0xff] %v585
        %650 = vst [vmem:[%s278 + $0xf0] sm:$0xff] %v586
        %651 = vst [vmem:[%s278 + $0xf8] sm:$0xff] %v587
        %652 = vst [vmem:[%s278 + $0x100] sm:$0xff] %v588
        %653 = vst [vmem:[%s278 + $0x108] sm:$0xff] %v589
        %654 = vst [vmem:[%s278 + $0x110] sm:$0xff] %v590
        %655 = vst [vmem:[%s278 + $0x118] sm:$0xff] %v591
        %656 = vst [vmem:[%s278 + $0x120] sm:$0xff] %v592
        %657 = vst [vmem:[%s278 + $0x128] sm:$0xff] %v593
        %658 = vst [vmem:[%s278 + $0x130] sm:$0xff] %v594
        %659 = vst [vmem:[%s278 + $0x138] sm:$0xff] %v595
        %660 = vst [vmem:[%s278 + $0x140] sm:$0xff] %v596
        %661 = vst [vmem:[%s278 + $0x148] sm:$0xff] %v597
        %662 = vst [vmem:[%s278 + $0x150] sm:$0xff] %v598
        %663 = vst [vmem:[%s278 + $0x158] sm:$0xff] %v599
        %664 = vst [vmem:[%s278 + $0x160] sm:$0xff] %v600
        %665 = vst [vmem:[%s278 + $0x168] sm:$0xff] %v601
        %666 = vst [vmem:[%s278 + $0x170] sm:$0xff] %v602
        %667 = vst [vmem:[%s278 + $0x178] sm:$0xff] %v603
        %668 = vst [vmem:[%s278 + $0x180] sm:$0xff] %v604
        %669 = vst [vmem:[%s278 + $0x188] sm:$0xff] %v605
        %670 = vst [vmem:[%s278 + $0x190] sm:$0xff] %v606
        %671 = vst [vmem:[%s278 + $0x198] sm:$0xff] %v607
        %672 = vst [vmem:[%s278 + $0x1a0] sm:$0xff] %v608
        %673 = vst [vmem:[%s278 + $0x1a8] sm:$0xff] %v609
        %674 = vst [vmem:[%s278 + $0x1b0] sm:$0xff] %v610
        %675 = vst [vmem:[%s278 + $0x1b8] sm:$0xff] %v611
        %676 = vst [vmem:[%s278 + $0x1c0] sm:$0xff] %v612
        %677 = vst [vmem:[%s278 + $0x1c8] sm:$0xff] %v613
        %678 = vst [vmem:[%s278 + $0x1d0] sm:$0xff] %v614
        %679 = vst [vmem:[%s278 + $0x1d8] sm:$0xff] %v615
        %680 = vst [vmem:[%s278 + $0x1e0] sm:$0xff] %v616
        %681 = vst [vmem:[%s278 + $0x1e8] sm:$0xff] %v617
        %682 = vst [vmem:[%s278 + $0x1f0] sm:$0xff] %v618
        %683 = vst [vmem:[%s278 + $0x1f8] sm:$0xff] %v619
        %v684 = vld [vmem:[%s4] sm:$0xff]
        %v685 = vld [vmem:[%s4 + $0x8] sm:$0xff]
        %v686 = vld [vmem:[%s244] sm:$0xff]
        %v687 = vld [vmem:[%s244 + $0x8] sm:$0xff]
        %v688 = vld [vmem:[%s244 + $0x10] sm:$0xff]
        %v689 = vld [vmem:[%s244 + $0x18] sm:$0xff]
        %v690 = vpack.c.bf16 %v557, %v556
        %v691 = vpack.c.bf16 %v559, %v558
        %v692 = vpack.c.bf16 %v561, %v560
        %v693 = vpack.c.bf16 %v563, %v562
        %v694 = vpack.c.bf16 %v565, %v564
        %v695 = vpack.c.bf16 %v567, %v566
        %v696 = vpack.c.bf16 %v569, %v568
        %v697 = vpack.c.bf16 %v571, %v570
        %v698 = vpack.c.bf16 %v573, %v572
        %v699 = vpack.c.bf16 %v575, %v574
        %v700 = vpack.c.bf16 %v577, %v576
        %v701 = vpack.c.bf16 %v579, %v578
        %v702 = vpack.c.bf16 %v581, %v580
        %v703 = vpack.c.bf16 %v583, %v582
        %v704 = vpack.c.bf16 %v585, %v584
        %v705 = vpack.c.bf16 %v587, %v586
        %v706 = vpack.c.bf16 %v589, %v588
        %v707 = vpack.c.bf16 %v591, %v590
        %v708 = vpack.c.bf16 %v593, %v592
        %v709 = vpack.c.bf16 %v595, %v594
        %v710 = vpack.c.bf16 %v597, %v596
        %v711 = vpack.c.bf16 %v599, %v598
        %v712 = vpack.c.bf16 %v601, %v600
        %v713 = vpack.c.bf16 %v603, %v602
        %v714 = vpack.c.bf16 %v605, %v604
        %v715 = vpack.c.bf16 %v607, %v606
        %v716 = vpack.c.bf16 %v609, %v608
        %v717 = vpack.c.bf16 %v611, %v610
        %v718 = vpack.c.bf16 %v613, %v612
        %v719 = vpack.c.bf16 %v615, %v614
        %v720 = vpack.c.bf16 %v617, %v616
        %v721 = vpack.c.bf16 %v619, %v618
        %v726 = vunpack.c.l.b16 %v686
        %v727 = vunpack.c.h.b16 %v686
        %v728 = vunpack.c.l.b16 %v687
        %v729 = vunpack.c.h.b16 %v687
        %v730 = vunpack.c.l.b16 %v688
        %v731 = vunpack.c.h.b16 %v688
        %v732 = vunpack.c.l.b16 %v689
        %v733 = vunpack.c.h.b16 %v689
        %v734 = vpack.c.b16 %v730, %v726
        %v735 = vpack.c.b16 %v731, %v727
        %v736 = vpack.c.b16 %v732, %v728
        %v737 = vpack.c.b16 %v733, %v729
        %742 = vmatprep.subr.bf16.mxu0 0
        %743 = vmatpush1.bf16.msra.mxu0 %v690
        %744 = vmatprep.subr.bf16.mxu0 0
        %745 = vmatpush1.bf16.msra.mxu0 %v691
        %746 = vmatprep.subr.bf16.mxu0 0
        %747 = vmatpush1.bf16.msra.mxu0 %v692
        %748 = vmatprep.subr.bf16.mxu0 0
        %749 = vmatpush1.bf16.msra.mxu0 %v693
        %750 = vmatprep.subr.bf16.mxu0 0
        %751 = vmatpush1.bf16.msra.mxu0 %v694
        %752 = vmatprep.subr.bf16.mxu0 0
        %753 = vmatpush1.bf16.msra.mxu0 %v695
        %754 = vmatprep.subr.bf16.mxu0 0
        %755 = vmatpush1.bf16.msra.mxu0 %v696
        %756 = vmatprep.subr.bf16.mxu0 0
        %757 = vmatpush1.bf16.msra.mxu0 %v697
        %758 = vmatprep.subr.bf16.mxu0 0
        %759 = vmatpush1.bf16.msra.mxu0 %v698
        %760 = vmatprep.subr.bf16.mxu0 0
        %761 = vmatpush1.bf16.msra.mxu0 %v699
        %762 = vmatprep.subr.bf16.mxu0 0
        %763 = vmatpush1.bf16.msra.mxu0 %v700
        %764 = vmatprep.subr.bf16.mxu0 0
        %765 = vmatpush1.bf16.msra.mxu0 %v701
        %766 = vmatprep.subr.bf16.mxu0 0
        %767 = vmatpush1.bf16.msra.mxu0 %v702
        %768 = vmatprep.subr.bf16.mxu0 0
        %769 = vmatpush1.bf16.msra.mxu0 %v703
        %770 = vmatprep.subr.bf16.mxu0 0
        %771 = vmatpush1.bf16.msra.mxu0 %v704
        %772 = vmatprep.subr.bf16.mxu0 0
        %773 = vmatpush1.bf16.msra.mxu0 %v705
        %774 = vmatprep.mubr.bf16.mxu0 %v735
        %775 = vmatmul.mubr.bf16.gmra.mrb[0].mxu0 %v734
        %v776 = vpop.f32.mrb[0].mxu0
        %v777 = vadd.f32 0.0, %v776
        %v778 = vpop.f32.mrb[0].mxu0
        %v779 = vpop.f32.mrb[0].mxu0
        %v780 = vadd.f32 0.0, %v779
        %v781 = vpop.f32.mrb[0].mxu0
        %782 = vdwg.mxu0
        %783 = vmatprep.subr.bf16.mxu0 0
        %784 = vmatpush1.bf16.msra.mxu0 %v706
        %785 = vmatprep.subr.bf16.mxu0 0
        %786 = vmatpush1.bf16.msra.mxu0 %v707
        %787 = vmatprep.subr.bf16.mxu0 0
        %788 = vmatpush1.bf16.msra.mxu0 %v708
        %789 = vmatprep.subr.bf16.mxu0 0
        %790 = vmatpush1.bf16.msra.mxu0 %v709
        %791 = vmatprep.subr.bf16.mxu0 0
        %792 = vmatpush1.bf16.msra.mxu0 %v710
        %793 = vmatprep.subr.bf16.mxu0 0
        %794 = vmatpush1.bf16.msra.mxu0 %v711
        %795 = vmatprep.subr.bf16.mxu0 0
        %796 = vmatpush1.bf16.msra.mxu0 %v712
        %797 = vmatprep.subr.bf16.mxu0 0
        %798 = vmatpush1.bf16.msra.mxu0 %v713
        %799 = vmatprep.subr.bf16.mxu0 0
        %800 = vmatpush1.bf16.msra.mxu0 %v714
        %801 = vmatprep.subr.bf16.mxu0 0
        %802 = vmatpush1.bf16.msra.mxu0 %v715
        %803 = vmatprep.subr.bf16.mxu0 0
        %804 = vmatpush1.bf16.msra.mxu0 %v716
        %805 = vmatprep.subr.bf16.mxu0 0
        %806 = vmatpush1.bf16.msra.mxu0 %v717
        %807 = vmatprep.subr.bf16.mxu0 0
        %808 = vmatpush1.bf16.msra.mxu0 %v718
        %809 = vmatprep.subr.bf16.mxu0 0
        %810 = vmatpush1.bf16.msra.mxu0 %v719
        %811 = vmatprep.subr.bf16.mxu0 0
        %812 = vmatpush1.bf16.msra.mxu0 %v720
        %813 = vmatprep.subr.bf16.mxu0 0
        %814 = vmatpush1.bf16.msra.mxu0 %v721
        %815 = vmatprep.mubr.bf16.mxu0 %v737
        %816 = vmatmul.mubr.bf16.gmra.mrb[0].mxu0 %v736
        %v817 = vpop.f32.mrb[0].mxu0
        %v818 = vadd.f32 %v777, %v817
        %v819 = vpop.f32.mrb[0].mxu0
        %v820 = vpop.f32.mrb[0].mxu0
        %v821 = vadd.f32 %v780, %v820
        %v822 = vpop.f32.mrb[0].mxu0
        %823 = vdwg.mxu0
        %v824 = vadd.f32 %v684, %v818
        %v825 = vadd.f32 %v685, %v821
        %826 = vst [vmem:[%s4] sm:$0xff] %v824
        %827 = vst [vmem:[%s4 + $0x8] sm:$0xff] %v825
        %p828 = scmp.eq.s32.totalorder %s20, 1
        // Predicated region
        $region64: #{moco_forward.4} parent=54 // pred_check
          %p829 = pneg %p828
        $region65: #{moco_forward.4} parent=54 // pred_check_branch
          %831 = sbr.rel (%p829) target = $region67
        $region66: #{moco_forward.4} parent=54 // pred_region
          %v832 = vld [vmem:[%s4] sm:$0xff]
          %v833 = vld [vmem:[%s4 + $0x8] sm:$0xff]
          %v834 = vld [vmem:[%s3] sm:$0x1]
          %v836 = vlaneseq
          %v837 = vshrl.u32 %v836, 7
          %v838 = vsub.s32 0, %v837
          %v839 = vrot.slane %v834, %v838
          %v841 = vadd.f32 %v832, %v839
          %v842 = vadd.f32 %v833, %v839
          %v843 = vmul.f32 %v841, %v841
          %v844 = vmul.f32 %v842, %v842
          %845 = vadd.xlane.f32.xlu0 %v843
          %v846 = vpop.xlane.xlu0 %845
          %847 = vadd.xlane.f32.xlu0 %v844
          %v848 = vpop.xlane.xlu0 %847
          %v849 = vmax.f32 %v846, 1e-24
          %v850 = vmax.f32 %v848, 1e-24
          %v851 = vrsqrt.pop %v849
          %v852 = vrsqrt.pop %v850
          %v853 = vmul.f32 %v841, %v851
          %v854 = vmul.f32 %v842, %v852
          %855 = vst [vmem:[%s4] sm:$0xff] %v853
          %856 = vst [vmem:[%s4 + $0x8] sm:$0xff] %v854
        $region67: #{moco_forward.4} parent=54 // pred_fallthru
          _
        %s857 = sand.u32 %s148, 1
        %s858 = scalar_lea.sflag [#allocation4], %s857
        %s859 = sand.u32 %s148, 1
        %s860 = smul.addr %s859, 512
        %s861 = scalar_lea.vmem [#allocation3], %s860
        // Predicated region
        $region68: #{moco_forward.4} parent=54 // pred_check
          %p862 = pneg %p132
        $region69: #{moco_forward.4} parent=54 // pred_check_branch
          %864 = sbr.rel (%p862) target = $region71
        $region70: #{moco_forward.4} parent=54 // pred_region
          _
        $region71: #{moco_forward.4} parent=54 // pred_fallthru
          _
        // Predicated region
        $region72: #{moco_forward.4} parent=54 // pred_check
          %p865 = pneg %p158
        $region73: #{moco_forward.4} parent=54 // pred_check_branch
          %867 = sbr.rel (%p865) target = $region75
        $region74: #{moco_forward.4} parent=54 // pred_region
          %s868 = smul.u32 64, %s20
          %s870 = ssub.s32 8192, 8192
          %871 = vsyncadd %s858, %s870
          %s872 = smul.addr %s868, 128
          %s873 = scalar_lea.hbm %s5, %s872
          %s874 = sshll.u32 %s861, 4
          %s875 = int_to_ptr.vmem [resolvable:$true] %s874
          %880 = dma.vmem_to_hbm [thread:$0]  %s875, 8192, %s873, %s858, 128, 128, 8
        $region75: #{moco_forward.4} parent=54 // pred_fallthru
          _
        // Predicated region
        $region76: #{moco_forward.4} parent=54 // pred_check
          %p881 = pneg %p132
        $region77: #{moco_forward.4} parent=54 // pred_check_branch
          %883 = sbr.rel (%p881) target = $region79
        $region78: #{moco_forward.4} parent=54 // pred_region
          _
        $region79: #{moco_forward.4} parent=54 // pred_fallthru
          _
      $region55: #{moco_forward.4} parent=5 // pred_fallthru
        _
      %p884 = scmp.le.s32.totalorder 2, %s15
      // Predicated region
      $region80: #{moco_forward.4} parent=5 // pred_check
        %p885 = pneg %p884
      $region81: #{moco_forward.4} parent=5 // pred_check_branch
        %887 = sbr.rel (%p885) target = $region83
      $region82: #{moco_forward.4} parent=5 // pred_region
        %s888 = ssub.s32 %s15, 2
        // Predicated region
        $region84: #{moco_forward.4} parent=82 // pred_check
          %p889 = pneg %p164
        $region85: #{moco_forward.4} parent=82 // pred_check_branch
          %891 = sbr.rel (%p889) target = $region87
        $region86: #{moco_forward.4} parent=82 // pred_region
          %s892 = sand.u32 %s149, 1
          %s893 = scalar_lea.sflag [#allocation4], %s892
          %s894 = sand.u32 %s149, 1
          %s895 = smul.addr %s894, 512
          %s896 = scalar_lea.vmem [#allocation3], %s895
          %897 = dma.done %s893, 8192
        $region87: #{moco_forward.4} parent=82 // pred_fallthru
          _
      $region83: #{moco_forward.4} parent=5 // pred_fallthru
        _
    $region6: #{moco_forward.4} parent=1 // loop_footer
      %s19 = sadd.s32 1, %s15
    $region7: #{moco_forward.4} parent=1 // loop_footer_branch
      %14 = sbr.rel target = $region3
    $region8: #{moco_forward.4} parent=1 // loop_exit
      _
    %898 = vsyncpa [#allocation4], 1
    %s899 = scalar_lea.sflag [#allocation4], 1
    %900 = vsyncpa %s899, 1

// kernel: moco_forward.3
$region0: #{moco_forward.3}
  #allocation0 [shape = 'u32[]', space=smem, size = 0x4, offset = 0x4, fixed_abs, tag = 'smem constant byte address 0x4 - core index']
  #allocation1 [shape = 'u32[144,128]{1,0:T(1,128)}', space=vmem, size = 0x12000, scoped, tag = 'internal scratch']
  %s0 = inlined_call_operand.vmem [shape: bf16[16,1024], index: 0, kind: input, shape index: {}]
  %s1 = inlined_call_operand.vmem [shape: bf16[1024,128], index: 1, kind: input, shape index: {}]
  %s2 = inlined_call_operand.vmem [shape: f32[1,128], index: 2, kind: input, shape index: {}]
  %s3 = inlined_call_operand.vmem [shape: f32[16,128], index: 3, kind: output, shape index: {}]
  %s4 = sld [smem:[#allocation0]]
  $region76: #{moco_forward.3} parent=0
    _
  %s6 = ssub.s32 1, %s4
  %s7 = scalar_select 0, %s6, %s4
  $region1: #{moco_forward.3} parent=0
    #allocation2 [shape = 'u8[32768]{0}', space=vmem, size = 0x8000, scoped, tag = 'input window, operand 0']
    loop: start=0, step=1, limit=4
    $region2: #{moco_forward.3} parent=1 // loop_pre_header
      _
    $region3: #{moco_forward.3} parent=1 // loop_header
      %s9 = sphi 0, %s13
      %p10 = scmp.ge.s32.totalorder %s9, 4
      %s16 = sphi 0, %s28
      %s17 = sphi 0, %s24
      %s18 = sphi 0, %s16
      %s19 = sphi 0, %s17
      %s20 = sphi 0, %s18
      %s21 = sphi 0, %s19
      %s33 = sphi 0, %s35
      %s36 = sphi 0, %s33
      %s37 = sphi 0, %s36
      %s53 = sphi 0, %s37
      %s59 = sphi 0, %s61
      %s62 = sphi 0, %s59
      %s63 = sphi 0, %s62
      %s79 = sphi 0, %s63
      %s83 = sphi 0, %s83
      %s85 = sphi 0, %s83
      %s86 = sphi 0, %s85
      %s100 = sphi 0, %s86
      %s106 = sphi 0, %s108
      %s109 = sphi 0, %s106
      %s110 = sphi 0, %s109
      %s126 = sphi 0, %s110
    $region4: #{moco_forward.3} parent=1 // loop_header_branch
      %12 = sbr.rel (%p10) target = $region8
    $region5: #{moco_forward.3} parent=1 // loop_body
      %s14 = ssub.s32 %s9, 1
      %s15 = ssub.s32 %s9, 2
      %s22 = sadd.s32 1, %s17
      %p23 = scmp.ge.s32.totalorder %s22, 2
      %s24 = scalar_select %p23, 0, %s22
      %s25 = sadd.s32 1, %s16
      %s26 = scalar_select %p23, %s25, %s16
      %p27 = scmp.ge.s32.totalorder %s26, 1
      %s28 = scalar_select %p27, 0, %s26
      %s29 = ssub.s32 %s16, %s28
      %s30 = ssub.s32 %s17, %s24
      %s31 = sor.u32 %s29, %s30
      %p32 = scmp.eq.s32.totalorder %s31, 0
      %s34 = sadd.s32 %s33, 1
      %s35 = scalar_select %p32, %s33, %s34
      %p38 = pneg %p32
      %p39 = scmp.eq.s32.totalorder %s9, 1
      %p40 = por %p38, %p39
      %p41 = scmp.ne.s32.totalorder %s33, %s36
      %p42 = scmp.eq.s32.totalorder %s9, 0
      %p43 = por %p41, %p42
      %p44 = scmp.ne.s32.totalorder %s33, %s36
      %p45 = scmp.eq.s32.totalorder %s14, 1
      %p46 = por %p44, %p45
      %p47 = scmp.ne.s32.totalorder %s36, %s37
      %p48 = scmp.eq.s32.totalorder %s14, 0
      %p49 = por %p47, %p48
      %p50 = scmp.ne.s32.totalorder %s36, %s37
      %p51 = scmp.eq.s32.totalorder %s15, 1
      %p52 = por %p50, %p51
      %p54 = scmp.ne.s32.totalorder %s37, %s53
      %p55 = scmp.eq.s32.totalorder %s15, 0
      %p56 = por %p54, %p55
      %s57 = ssub.s32 %s17, %s24
      %p58 = scmp.eq.s32.totalorder %s57, 0
      %s60 = sadd.s32 %s59, 1
      %s61 = scalar_select %p58, %s59, %s60
      %p64 = pneg %p58
      %p65 = scmp.eq.s32.totalorder %s9, 1
      %p66 = por %p64, %p65
      %p67 = scmp.ne.s32.totalorder %s59, %s62
      %p68 = scmp.eq.s32.totalorder %s9, 0
      %p69 = por %p67, %p68
      %p70 = scmp.ne.s32.totalorder %s59, %s62
      %p71 = scmp.eq.s32.totalorder %s14, 1
      %p72 = por %p70, %p71
      %p73 = scmp.ne.s32.totalorder %s62, %s63
      %p74 = scmp.eq.s32.totalorder %s14, 0
      %p75 = por %p73, %p74
      %p76 = scmp.ne.s32.totalorder %s62, %s63
      %p77 = scmp.eq.s32.totalorder %s15, 1
      %p78 = por %p76, %p77
      %p80 = scmp.ne.s32.totalorder %s63, %s79
      %p81 = scmp.eq.s32.totalorder %s15, 0
      %p82 = por %p80, %p81
      %s84 = sadd.s32 %s83, 1
      %p87 = scmp.eq.s32.totalorder %s9, 1
      %p88 = scmp.ne.s32.totalorder %s83, %s85
      %p89 = scmp.eq.s32.totalorder %s9, 0
      %p90 = por %p88, %p89
      %p91 = scmp.ne.s32.totalorder %s83, %s85
      %p92 = scmp.eq.s32.totalorder %s14, 1
      %p93 = por %p91, %p92
      %p94 = scmp.ne.s32.totalorder %s85, %s86
      %p95 = scmp.eq.s32.totalorder %s14, 0
      %p96 = por %p94, %p95
      %p97 = scmp.ne.s32.totalorder %s85, %s86
      %p98 = scmp.eq.s32.totalorder %s15, 1
      %p99 = por %p97, %p98
      %p101 = scmp.ne.s32.totalorder %s86, %s100
      %p102 = scmp.eq.s32.totalorder %s15, 0
      %p103 = por %p101, %p102
      %s104 = ssub.s32 %s16, %s28
      %p105 = scmp.eq.s32.totalorder %s104, 0
      %s107 = sadd.s32 %s106, 1
      %s108 = scalar_select %p105, %s106, %s107
      %p111 = pneg %p105
      %p112 = scmp.eq.s32.totalorder %s9, 1
      %p113 = por %p111, %p112
      %p114 = scmp.ne.s32.totalorder %s106, %s109
      %p115 = scmp.eq.s32.totalorder %s9, 0
      %p116 = por %p114, %p115
      %p117 = scmp.ne.s32.totalorder %s106, %s109
      %p118 = scmp.eq.s32.totalorder %s14, 1
      %p119 = por %p117, %p118
      %p120 = scmp.ne.s32.totalorder %s109, %s110
      %p121 = scmp.eq.s32.totalorder %s14, 0
      %p122 = por %p120, %p121
      %p123 = scmp.ne.s32.totalorder %s109, %s110
      %p124 = scmp.eq.s32.totalorder %s15, 1
      %p125 = por %p123, %p124
      %p127 = scmp.ne.s32.totalorder %s110, %s126
      %p128 = scmp.eq.s32.totalorder %s15, 0
      %p129 = por %p127, %p128
      %p130 = scmp.le.s32.totalorder 1, %s9
      %p131 = scmp.lt.s32.totalorder %s9, 3
      %p132 = pnand %p130, %p131
      %p133 = pneg %p132
      // Predicated region
      $region9: #{moco_forward.3} parent=5 // pred_check
        _
      $region10: #{moco_forward.3} parent=5 // pred_check_branch
        %135 = sbr.rel (%p132) target = $region12
      $region11: #{moco_forward.3} parent=5 // pred_region
        %s136 = ssub.s32 %s9, 1
        // Predicated region
        $region13: #{moco_forward.3} parent=11 // pred_check
          %p137 = pneg %p96
        $region14: #{moco_forward.3} parent=11 // pred_check_branch
          %139 = sbr.rel (%p137) target = $region16
        $region15: #{moco_forward.3} parent=11 // pred_region
          _
        $region16: #{moco_forward.3} parent=11 // pred_fallthru
          _
      $region12: #{moco_forward.3} parent=5 // pred_fallthru
        _
      %p140 = scmp.lt.s32.totalorder %s9, 2
      // Predicated region
      $region17: #{moco_forward.3} parent=5 // pred_check
        %p141 = pneg %p140
      $region18: #{moco_forward.3} parent=5 // pred_check_branch
        %143 = sbr.rel (%p141) target = $region20
      $region19: #{moco_forward.3} parent=5 // pred_region
        // Predicated region
        $region21: #{moco_forward.3} parent=19 // pred_check
          %p144 = pneg %p43
        $region22: #{moco_forward.3} parent=19 // pred_check_branch
          %146 = sbr.rel (%p144) target = $region24
        $region23: #{moco_forward.3} parent=19 // pred_region
          %s147 = sand.u32 %s33, 1
          %s148 = sand.u32 %s33, 1
          %s149 = smul.addr %s148, 32
          %s150 = scalar_lea.vmem [#allocation2], %s149
          %s151 = smul.u32 2, %s16
          %s152 = smul.u32 4, %s17
          %s153 = smul.addr %s151, 8
          %s154 = sadd.s32 %s152, %s153
          %s155 = smul.addr %s154, 4
          %s156 = scalar_lea.vmem %s0, %s155
          // Predicated region
          $region25: #{moco_forward.3} parent=23 // pred_check
            _
          $region26: #{moco_forward.3} parent=23 // pred_check_branch
            %158 = sbr.rel (0) target = $region28
          $region27: #{moco_forward.3} parent=23 // pred_region
            // Predicated region
            $region29: #{moco_forward.3} parent=27 // pred_check
              _
            $region30: #{moco_forward.3} parent=27 // pred_check_branch
              %160 = sbr.rel (0) target = $region32
            $region31: #{moco_forward.3} parent=27 // pred_region
              loop: start=0, step=1, limit=1
              $region33: #{moco_forward.3} parent=31 // loop_pre_header
                _
              $region34: #{moco_forward.3} parent=31 // loop_header
                %s162 = sphi 0, %s166
                %p163 = scmp.ge.s32.totalorder %s162, 1
                %s167 = sphi %s156, %s156
                %s168 = sphi %s150, %s150
              $region35: #{moco_forward.3} parent=31 // loop_header_branch
                %165 = sbr.rel (%p163) target = $region39
              $region36: #{moco_forward.3} parent=31 // loop_body
                %v169 = vld [vmem:[%s167] sm:$0xff]
                %170 = vst [vmem:[%s168] sm:$0xff] %v169
                %v171 = vld [vmem:[%s167 + $0x8] sm:$0xff]
                %172 = vst [vmem:[%s168 + $0x8] sm:$0xff] %v171
                %v173 = vld [vmem:[%s167 + $0x20] sm:$0xff]
                %174 = vst [vmem:[%s168 + $0x10] sm:$0xff] %v173
                %v175 = vld [vmem:[%s167 + $0x28] sm:$0xff]
                %176 = vst [vmem:[%s168 + $0x18] sm:$0xff] %v175
              $region37: #{moco_forward.3} parent=31 // loop_footer
                %s166 = sadd.s32 1, %s162
              $region38: #{moco_forward.3} parent=31 // loop_footer_branch
                %161 = sbr.rel target = $region34
              $region39: #{moco_forward.3} parent=31 // loop_exit
                _
            $region32: #{moco_forward.3} parent=27 // pred_fallthru
              _
            // Predicated region
            $region40: #{moco_forward.3} parent=27 // pred_check
              _
            $region41: #{moco_forward.3} parent=27 // pred_check_branch
              %178 = sbr.rel target = $region43
            $region42: #{moco_forward.3} parent=27 // pred_region
              _
            $region43: #{moco_forward.3} parent=27 // pred_fallthru
              _
          $region28: #{moco_forward.3} parent=23 // pred_fallthru
            _
          %179 = vnop
        $region24: #{moco_forward.3} parent=19 // pred_fallthru
          _
        // Predicated region
        $region44: #{moco_forward.3} parent=19 // pred_check
          %p180 = pneg %p69
        $region45: #{moco_forward.3} parent=19 // pred_check_branch
          %182 = sbr.rel (%p180) target = $region47
        $region46: #{moco_forward.3} parent=19 // pred_region
          %s183 = smul.u32 64, %s17
          %p184 = scmp.lt.s32.totalorder %s183, 127
          %s185 = scalar_select %p184, %s183, 127
          %s186 = smul.addr %s185, 4
          %s187 = scalar_lea.vmem %s1, %s186
          %s188 = smul.u32 64, %s17
        $region47: #{moco_forward.3} parent=19 // pred_fallthru
          _
      $region20: #{moco_forward.3} parent=5 // pred_fallthru
        _
      %p189 = scmp.le.s32.totalorder 1, %s9
      %p190 = scmp.lt.s32.totalorder %s9, 3
      %p191 = pnand %p189, %p190
      %p192 = pneg %p191
      // Predicated region
      $region48: #{moco_forward.3} parent=5 // pred_check
        _
      $region49: #{moco_forward.3} parent=5 // pred_check_branch
        %194 = sbr.rel (%p191) target = $region51
      $region50: #{moco_forward.3} parent=5 // pred_region
        %s195 = ssub.s32 %s9, 1
        %s196 = sand.u32 %s36, 1
        %s197 = sand.u32 %s36, 1
        %s198 = smul.addr %s197, 32
        %s199 = scalar_lea.vmem [#allocation2], %s198
        // Predicated region
        $region52: #{moco_forward.3} parent=50 // pred_check
          %p200 = pneg %p49
        $region53: #{moco_forward.3} parent=50 // pred_check_branch
          %202 = sbr.rel (%p200) target = $region55
        $region54: #{moco_forward.3} parent=50 // pred_region
          _
        $region55: #{moco_forward.3} parent=50 // pred_fallthru
          _
        %s203 = sand.u32 %s36, 1
        %s204 = sand.u32 %s36, 1
        %s205 = smul.addr %s204, 32
        %s206 = scalar_lea.vmem [#allocation2], %s205
        %p207 = pneg %p49
        %p208 = pneg %p46
        %s209 = smul.u32 64, %s19
        %p210 = scmp.lt.s32.totalorder %s209, 127
        %s211 = scalar_select %p210, %s209, 127
        %s212 = smul.addr %s211, 4
        %s213 = scalar_lea.vmem %s1, %s212
        %p214 = pneg %p75
        %p215 = pneg %p72
        %p216 = pneg %p96
        %p217 = pneg %p93
        %p218 = pneg %p122
        %p219 = pneg %p119
        %s220 = smul.u32 2, %s18
        %p221 = scmp.lt.s32.totalorder %s220, 1
        %s222 = scalar_select %p221, %s220, 1
        %s223 = smul.addr %s222, 8
        %s224 = scalar_lea.vmem %s3, %s223
        %s225 = smul.u32 2, %s18
        %s226 = smul.u32 4, %s19
        %s227 = smul.u32 64, %s19
        %p228 = scmp.lt.s32.totalorder %s227, 127
        %s229 = scalar_select %p228, %s227, 127
        %s230 = smul.addr %s229, 4
        %s231 = scalar_lea.vmem %s1, %s230
        %s232 = smul.u32 64, %s19
        %s233 = smul.u32 2, %s18
        %p234 = scmp.lt.s32.totalorder %s233, 1
        %s235 = scalar_select %p234, %s233, 1
        %s236 = smul.addr %s235, 8
        %s237 = scalar_lea.vmem %s3, %s236
        %s238 = smul.u32 2, %s18
        %p240 = scmp.eq.s32.totalorder %s19, 0
        // Predicated region
        $region56: #{moco_forward.3} parent=50 // pred_check
          %p241 = pneg %p240
        $region57: #{moco_forward.3} parent=50 // pred_check_branch
          %243 = sbr.rel (%p241) target = $region59
        $region58: #{moco_forward.3} parent=50 // pred_region
          %244 = vst [vmem:[%s237] sm:$0xff] 0.0
          %245 = vst [vmem:[%s237 + $0x8] sm:$0xff] 0.0
        $region59: #{moco_forward.3} parent=50 // pred_fallthru
          _
        %v246 = vld [vmem:[%s237] sm:$0xff]
        %v247 = vld [vmem:[%s237 + $0x8] sm:$0xff]
        %v248 = vld [vmem:[%s199] sm:$0xff]
        %v249 = vld [vmem:[%s199 + $0x8] sm:$0xff]
        %v250 = vld [vmem:[%s199 + $0x10] sm:$0xff]
        %v251 = vld [vmem:[%s199 + $0x18] sm:$0xff]
        %v252 = vld [vmem:[%s231] sm:$0xf]
        %v253 = vld [vmem:[%s231 + $0x4] sm:$0xf]
        %v254 = vld [vmem:[%s231 + $0x8] sm:$0xf]
        %v255 = vld [vmem:[%s231 + $0xc] sm:$0xf]
        %v256 = vld [vmem:[%s231 + $0x10] sm:$0xf]
        %v257 = vld [vmem:[%s231 + $0x14] sm:$0xf]
        %v258 = vld [vmem:[%s231 + $0x18] sm:$0xf]
        %v259 = vld [vmem:[%s231 + $0x1c] sm:$0xf]
        %v260 = vld [vmem:[%s231 + $0x20] sm:$0xf]
        %v261 = vld [vmem:[%s231 + $0x24] sm:$0xf]
        %v262 = vld [vmem:[%s231 + $0x28] sm:$0xf]
        %v263 = vld [vmem:[%s231 + $0x2c] sm:$0xf]
        %v264 = vld [vmem:[%s231 + $0x30] sm:$0xf]
        %v265 = vld [vmem:[%s231 + $0x34] sm:$0xf]
        %v266 = vld [vmem:[%s231 + $0x38] sm:$0xf]
        %v267 = vld [vmem:[%s231 + $0x3c] sm:$0xf]
        %v268 = vld [vmem:[%s231 + $0x40] sm:$0xf]
        %v269 = vld [vmem:[%s231 + $0x44] sm:$0xf]
        %v270 = vld [vmem:[%s231 + $0x48] sm:$0xf]
        %v271 = vld [vmem:[%s231 + $0x4c] sm:$0xf]
        %v272 = vld [vmem:[%s231 + $0x50] sm:$0xf]
        %v273 = vld [vmem:[%s231 + $0x54] sm:$0xf]
        %v274 = vld [vmem:[%s231 + $0x58] sm:$0xf]
        %v275 = vld [vmem:[%s231 + $0x5c] sm:$0xf]
        %v276 = vld [vmem:[%s231 + $0x60] sm:$0xf]
        %v277 = vld [vmem:[%s231 + $0x64] sm:$0xf]
        %v278 = vld [vmem:[%s231 + $0x68] sm:$0xf]
        %v279 = vld [vmem:[%s231 + $0x6c] sm:$0xf]
        %v280 = vld [vmem:[%s231 + $0x70] sm:$0xf]
        %v281 = vld [vmem:[%s231 + $0x74] sm:$0xf]
        %v282 = vld [vmem:[%s231 + $0x78] sm:$0xf]
        %v283 = vld [vmem:[%s231 + $0x7c] sm:$0xf]
        %v284 = vld [vmem:[%s231 + $0x80] sm:$0xf]
        %v285 = vld [vmem:[%s231 + $0x84] sm:$0xf]
        %v286 = vld [vmem:[%s231 + $0x88] sm:$0xf]
        %v287 = vld [vmem:[%s231 + $0x8c] sm:$0xf]
        %v288 = vld [vmem:[%s231 + $0x90] sm:$0xf]
        %v289 = vld [vmem:[%s231 + $0x94] sm:$0xf]
        %v290 = vld [vmem:[%s231 + $0x98] sm:$0xf]
        %v291 = vld [vmem:[%s231 + $0x9c] sm:$0xf]
        %v292 = vld [vmem:[%s231 + $0xa0] sm:$0xf]
        %v293 = vld [vmem:[%s231 + $0xa4] sm:$0xf]
        %v294 = vld [vmem:[%s231 + $0xa8] sm:$0xf]
        %v295 = vld [vmem:[%s231 + $0xac] sm:$0xf]
        %v296 = vld [vmem:[%s231 + $0xb0] sm:$0xf]
        %v297 = vld [vmem:[%s231 + $0xb4] sm:$0xf]
        %v298 = vld [vmem:[%s231 + $0xb8] sm:$0xf]
        %v299 = vld [vmem:[%s231 + $0xbc] sm:$0xf]
        %v300 = vld [vmem:[%s231 + $0xc0] sm:$0xf]
        %v301 = vld [vmem:[%s231 + $0xc4] sm:$0xf]
        %v302 = vld [vmem:[%s231 + $0xc8] sm:$0xf]
        %v303 = vld [vmem:[%s231 + $0xcc] sm:$0xf]
        %v304 = vld [vmem:[%s231 + $0xd0] sm:$0xf]
        %v305 = vld [vmem:[%s231 + $0xd4] sm:$0xf]
        %v306 = vld [vmem:[%s231 + $0xd8] sm:$0xf]
        %v307 = vld [vmem:[%s231 + $0xdc] sm:$0xf]
        %v308 = vld [vmem:[%s231 + $0xe0] sm:$0xf]
        %v309 = vld [vmem:[%s231 + $0xe4] sm:$0xf]
        %v310 = vld [vmem:[%s231 + $0xe8] sm:$0xf]
        %v311 = vld [vmem:[%s231 + $0xec] sm:$0xf]
        %v312 = vld [vmem:[%s231 + $0xf0] sm:$0xf]
        %v313 = vld [vmem:[%s231 + $0xf4] sm:$0xf]
        %v314 = vld [vmem:[%s231 + $0xf8] sm:$0xf]
        %v315 = vld [vmem:[%s231 + $0xfc] sm:$0xf]
        %v320 = vunpack.c.l.b16 %v248
        %v321 = vunpack.c.h.b16 %v248
        %v322 = vunpack.c.l.b16 %v249
        %v323 = vunpack.c.h.b16 %v249
        %v324 = vunpack.c.l.b16 %v250
        %v325 = vunpack.c.h.b16 %v250
        %v326 = vunpack.c.l.b16 %v251
        %v327 = vunpack.c.h.b16 %v251
        %v328 = vpack.c.b16 %v324, %v320
        %v329 = vpack.c.b16 %v325, %v321
        %v330 = vpack.c.b16 %v326, %v322
        %v331 = vpack.c.b16 %v327, %v323
        %v400 = vunpack.c.l.b16 %v252
        %v401 = vunpack.c.l.b16 %v253
        %v402 = vunpack.c.l.b16 %v254
        %v403 = vunpack.c.l.b16 %v255
        %v404 = vunpack.c.l.b16 %v256
        %v405 = vunpack.c.l.b16 %v257
        %v406 = vunpack.c.l.b16 %v258
        %v407 = vunpack.c.l.b16 %v259
        %v408 = vunpack.c.l.b16 %v260
        %v409 = vunpack.c.l.b16 %v261
        %v410 = vunpack.c.l.b16 %v262
        %v411 = vunpack.c.l.b16 %v263
        %v412 = vunpack.c.l.b16 %v264
        %v413 = vunpack.c.l.b16 %v265
        %v414 = vunpack.c.l.b16 %v266
        %v415 = vunpack.c.l.b16 %v267
        %v416 = vunpack.c.l.b16 %v268
        %v417 = vunpack.c.l.b16 %v269
        %v418 = vunpack.c.l.b16 %v270
        %v419 = vunpack.c.l.b16 %v271
        %v420 = vunpack.c.l.b16 %v272
        %v421 = vunpack.c.l.b16 %v273
        %v422 = vunpack.c.l.b16 %v274
        %v423 = vunpack.c.l.b16 %v275
        %v424 = vunpack.c.l.b16 %v276
        %v425 = vunpack.c.l.b16 %v277
        %v426 = vunpack.c.l.b16 %v278
        %v427 = vunpack.c.l.b16 %v279
        %v428 = vunpack.c.l.b16 %v280
        %v429 = vunpack.c.l.b16 %v281
        %v430 = vunpack.c.l.b16 %v282
        %v431 = vunpack.c.l.b16 %v283
        %v432 = vunpack.c.l.b16 %v284
        %v433 = vunpack.c.l.b16 %v285
        %v434 = vunpack.c.l.b16 %v286
        %v435 = vunpack.c.l.b16 %v287
        %v436 = vunpack.c.l.b16 %v288
        %v437 = vunpack.c.l.b16 %v289
        %v438 = vunpack.c.l.b16 %v290
        %v439 = vunpack.c.l.b16 %v291
        %v440 = vunpack.c.l.b16 %v292
        %v441 = vunpack.c.l.b16 %v293
        %v442 = vunpack.c.l.b16 %v294
        %v443 = vunpack.c.l.b16 %v295
        %v444 = vunpack.c.l.b16 %v296
        %v445 = vunpack.c.l.b16 %v297
        %v446 = vunpack.c.l.b16 %v298
        %v447 = vunpack.c.l.b16 %v299
        %v448 = vunpack.c.l.b16 %v300
        %v449 = vunpack.c.l.b16 %v301
        %v450 = vunpack.c.l.b16 %v302
        %v451 = vunpack.c.l.b16 %v303
        %v452 = vunpack.c.l.b16 %v304
        %v453 = vunpack.c.l.b16 %v305
        %v454 = vunpack.c.l.b16 %v306
        %v455 = vunpack.c.l.b16 %v307
        %v456 = vunpack.c.l.b16 %v308
        %v457 = vunpack.c.l.b16 %v309
        %v458 = vunpack.c.l.b16 %v310
        %v459 = vunpack.c.l.b16 %v311
        %v460 = vunpack.c.l.b16 %v312
        %v461 = vunpack.c.l.b16 %v313
        %v462 = vunpack.c.l.b16 %v314
        %v463 = vunpack.c.l.b16 %v315
        %v464 = vpack.c.b16 %v401, %v400
        %v465 = vpack.c.b16 %v403, %v402
        %v466 = vpack.c.b16 %v405, %v404
        %v467 = vpack.c.b16 %v407, %v406
        %v468 = vpack.c.b16 %v409, %v408
        %v469 = vpack.c.b16 %v411, %v410
        %v470 = vpack.c.b16 %v413, %v412
        %v471 = vpack.c.b16 %v415, %v414
        %v472 = vpack.c.b16 %v417, %v416
        %v473 = vpack.c.b16 %v419, %v418
        %v474 = vpack.c.b16 %v421, %v420
        %v475 = vpack.c.b16 %v423, %v422
        %v476 = vpack.c.b16 %v425, %v424
        %v477 = vpack.c.b16 %v427, %v426
        %v478 = vpack.c.b16 %v429, %v428
        %v479 = vpack.c.b16 %v431, %v430
        %v480 = vpack.c.b16 %v433, %v432
        %v481 = vpack.c.b16 %v435, %v434
        %v482 = vpack.c.b16 %v437, %v436
        %v483 = vpack.c.b16 %v439, %v438
        %v484 = vpack.c.b16 %v441, %v440
        %v485 = vpack.c.b16 %v443, %v442
        %v486 = vpack.c.b16 %v445, %v444
        %v487 = vpack.c.b16 %v447, %v446
        %v488 = vpack.c.b16 %v449, %v448
        %v489 = vpack.c.b16 %v451, %v450
        %v490 = vpack.c.b16 %v453, %v452
        %v491 = vpack.c.b16 %v455, %v454
        %v492 = vpack.c.b16 %v457, %v456
        %v493 = vpack.c.b16 %v459, %v458
        %v494 = vpack.c.b16 %v461, %v460
        %v495 = vpack.c.b16 %v463, %v462
        %528 = vmatprep.subr.bf16.mxu0 0
        %529 = vmatpush1.bf16.msra.mxu0 %v464
        %530 = vmatprep.subr.bf16.mxu0 0
        %531 = vmatpush1.bf16.msra.mxu0 %v465
        %532 = vmatprep.subr.bf16.mxu0 0
        %533 = vmatpush1.bf16.msra.mxu0 %v466
        %534 = vmatprep.subr.bf16.mxu0 0
        %535 = vmatpush1.bf16.msra.mxu0 %v467
        %536 = vmatprep.subr.bf16.mxu0 0
        %537 = vmatpush1.bf16.msra.mxu0 %v468
        %538 = vmatprep.subr.bf16.mxu0 0
        %539 = vmatpush1.bf16.msra.mxu0 %v469
        %540 = vmatprep.subr.bf16.mxu0 0
        %541 = vmatpush1.bf16.msra.mxu0 %v470
        %542 = vmatprep.subr.bf16.mxu0 0
        %543 = vmatpush1.bf16.msra.mxu0 %v471
        %544 = vmatprep.subr.bf16.mxu0 0
        %545 = vmatpush1.bf16.msra.mxu0 %v472
        %546 = vmatprep.subr.bf16.mxu0 0
        %547 = vmatpush1.bf16.msra.mxu0 %v473
        %548 = vmatprep.subr.bf16.mxu0 0
        %549 = vmatpush1.bf16.msra.mxu0 %v474
        %550 = vmatprep.subr.bf16.mxu0 0
        %551 = vmatpush1.bf16.msra.mxu0 %v475
        %552 = vmatprep.subr.bf16.mxu0 0
        %553 = vmatpush1.bf16.msra.mxu0 %v476
        %554 = vmatprep.subr.bf16.mxu0 0
        %555 = vmatpush1.bf16.msra.mxu0 %v477
        %556 = vmatprep.subr.bf16.mxu0 0
        %557 = vmatpush1.bf16.msra.mxu0 %v478
        %558 = vmatprep.subr.bf16.mxu0 0
        %559 = vmatpush1.bf16.msra.mxu0 %v479
        %560 = vmatprep.mubr.bf16.mxu0 %v329
        %561 = vmatmul.mubr.bf16.gmra.mrb[0].mxu0 %v328
        %v562 = vpop.f32.mrb[0].mxu0
        %v563 = vadd.f32 0.0, %v562
        %v564 = vpop.f32.mrb[0].mxu0
        %v565 = vpop.f32.mrb[0].mxu0
        %v566 = vadd.f32 0.0, %v565
        %v567 = vpop.f32.mrb[0].mxu0
        %568 = vdwg.mxu0
        %569 = vmatprep.subr.bf16.mxu0 0
        %570 = vmatpush1.bf16.msra.mxu0 %v480
        %571 = vmatprep.subr.bf16.mxu0 0
        %572 = vmatpush1.bf16.msra.mxu0 %v481
        %573 = vmatprep.subr.bf16.mxu0 0
        %574 = vmatpush1.bf16.msra.mxu0 %v482
        %575 = vmatprep.subr.bf16.mxu0 0
        %576 = vmatpush1.bf16.msra.mxu0 %v483
        %577 = vmatprep.subr.bf16.mxu0 0
        %578 = vmatpush1.bf16.msra.mxu0 %v484
        %579 = vmatprep.subr.bf16.mxu0 0
        %580 = vmatpush1.bf16.msra.mxu0 %v485
        %581 = vmatprep.subr.bf16.mxu0 0
        %582 = vmatpush1.bf16.msra.mxu0 %v486
        %583 = vmatprep.subr.bf16.mxu0 0
        %584 = vmatpush1.bf16.msra.mxu0 %v487
        %585 = vmatprep.subr.bf16.mxu0 0
        %586 = vmatpush1.bf16.msra.mxu0 %v488
        %587 = vmatprep.subr.bf16.mxu0 0
        %588 = vmatpush1.bf16.msra.mxu0 %v489
        %589 = vmatprep.subr.bf16.mxu0 0
        %590 = vmatpush1.bf16.msra.mxu0 %v490
        %591 = vmatprep.subr.bf16.mxu0 0
        %592 = vmatpush1.bf16.msra.mxu0 %v491
        %593 = vmatprep.subr.bf16.mxu0 0
        %594 = vmatpush1.bf16.msra.mxu0 %v492
        %595 = vmatprep.subr.bf16.mxu0 0
        %596 = vmatpush1.bf16.msra.mxu0 %v493
        %597 = vmatprep.subr.bf16.mxu0 0
        %598 = vmatpush1.bf16.msra.mxu0 %v494
        %599 = vmatprep.subr.bf16.mxu0 0
        %600 = vmatpush1.bf16.msra.mxu0 %v495
        %601 = vmatprep.mubr.bf16.mxu0 %v331
        %602 = vmatmul.mubr.bf16.gmra.mrb[0].mxu0 %v330
        %v603 = vpop.f32.mrb[0].mxu0
        %v604 = vadd.f32 %v563, %v603
        %v605 = vpop.f32.mrb[0].mxu0
        %v606 = vpop.f32.mrb[0].mxu0
        %v607 = vadd.f32 %v566, %v606
        %v608 = vpop.f32.mrb[0].mxu0
        %609 = vdwg.mxu0
        %v610 = vadd.f32 %v246, %v604
        %v611 = vadd.f32 %v247, %v607
        %612 = vst [vmem:[%s237] sm:$0xff] %v610
        %613 = vst [vmem:[%s237 + $0x8] sm:$0xff] %v611
        %p614 = scmp.eq.s32.totalorder %s19, 1
        // Predicated region
        $region60: #{moco_forward.3} parent=50 // pred_check
          %p615 = pneg %p614
        $region61: #{moco_forward.3} parent=50 // pred_check_branch
          %617 = sbr.rel (%p615) target = $region63
        $region62: #{moco_forward.3} parent=50 // pred_region
          %v618 = vld [vmem:[%s237] sm:$0xff]
          %v619 = vld [vmem:[%s237 + $0x8] sm:$0xff]
          %v620 = vld [vmem:[%s2] sm:$0x1]
          %v622 = vlaneseq
          %v623 = vshrl.u32 %v622, 7
          %v624 = vsub.s32 0, %v623
          %v625 = vrot.slane %v620, %v624
          %v627 = vadd.f32 %v618, %v625
          %v628 = vadd.f32 %v619, %v625
          %v629 = vmul.f32 %v627, %v627
          %v630 = vmul.f32 %v628, %v628
          %631 = vadd.xlane.f32.xlu0 %v629
          %v632 = vpop.xlane.xlu0 %631
          %633 = vadd.xlane.f32.xlu0 %v630
          %v634 = vpop.xlane.xlu0 %633
          %v635 = vmax.f32 %v632, 1e-24
          %v636 = vmax.f32 %v634, 1e-24
          %v637 = vrsqrt.pop %v635
          %v638 = vrsqrt.pop %v636
          %v639 = vmul.f32 %v627, %v637
          %v640 = vmul.f32 %v628, %v638
          %641 = vst [vmem:[%s237] sm:$0xff] %v639
          %642 = vst [vmem:[%s237 + $0x8] sm:$0xff] %v640
        $region63: #{moco_forward.3} parent=50 // pred_fallthru
          _
        %s643 = smul.u32 2, %s18
        %p644 = scmp.lt.s32.totalorder %s643, 1
        %s645 = scalar_select %p644, %s643, 1
        %s646 = smul.addr %s645, 8
        %s647 = scalar_lea.vmem %s3, %s646
        // Predicated region
        $region64: #{moco_forward.3} parent=50 // pred_check
          %p648 = pneg %p119
        $region65: #{moco_forward.3} parent=50 // pred_check_branch
          %650 = sbr.rel (%p648) target = $region67
        $region66: #{moco_forward.3} parent=50 // pred_region
          %s651 = smul.u32 2, %s18
        $region67: #{moco_forward.3} parent=50 // pred_fallthru
          _
        // Predicated region
        $region68: #{moco_forward.3} parent=50 // pred_check
          %p652 = pneg %p119
        $region69: #{moco_forward.3} parent=50 // pred_check_branch
          %654 = sbr.rel (%p652) target = $region71
        $region70: #{moco_forward.3} parent=50 // pred_region
          %s655 = smul.u32 2, %s18
          %p656 = scmp.lt.s32.totalorder %s655, 1
          %s657 = scalar_select %p656, %s655, 1
          %s658 = smul.addr %s657, 8
          %s659 = scalar_lea.vmem %s3, %s658
        $region71: #{moco_forward.3} parent=50 // pred_fallthru
          _
      $region51: #{moco_forward.3} parent=5 // pred_fallthru
        _
      %p660 = scmp.le.s32.totalorder 2, %s9
      // Predicated region
      $region72: #{moco_forward.3} parent=5 // pred_check
        %p661 = pneg %p660
      $region73: #{moco_forward.3} parent=5 // pred_check_branch
        %663 = sbr.rel (%p661) target = $region75
      $region74: #{moco_forward.3} parent=5 // pred_region
        %s664 = ssub.s32 %s9, 2
      $region75: #{moco_forward.3} parent=5 // pred_fallthru
        _
    $region6: #{moco_forward.3} parent=1 // loop_footer
      %s13 = sadd.s32 1, %s9
    $region7: #{moco_forward.3} parent=1 // loop_footer_branch
      %8 = sbr.rel target = $region3
    $region8: #{moco_forward.3} parent=1 // loop_exit
      _

// kernel: moco_forward.5
$region0: #{moco_forward.5}
  #allocation0 [shape = 'u32[]', space=smem, size = 0x4, offset = 0x4, fixed_abs, tag = 'smem constant byte address 0x4 - core index']
  #allocation1 [shape = 'u32[144,128]{1,0:T(1,128)}', space=vmem, size = 0x12000, scoped, tag = 'internal scratch']
  %s0 = inlined_call_operand.vmem [shape: f32[16,128], index: 0, kind: input, shape index: {}]
  %s1 = inlined_call_operand.vmem [shape: f32[16,128], index: 1, kind: input, shape index: {}]
  %s2 = inlined_call_operand.vmem [shape: bf16[128,1024], index: 2, kind: input, shape index: {}]
  %s3 = inlined_call_operand.vmem [shape: f32[16,1024], index: 3, kind: output, shape index: {0}]
  %s4 = inlined_call_operand.vmem [shape: f32[16,128], index: 4, kind: output, shape index: {1}]
  %5 = xla_tuple %s3, %s4
  %s6 = sld [smem:[#allocation0]]
  $region34: #{moco_forward.5} parent=0
    _
  %s8 = ssub.s32 1, %s6
  %s9 = scalar_select 0, %s8, %s6
  // Predicated region
  $region2: #{moco_forward.5} parent=0 // pred_check
    _
  $region3: #{moco_forward.5} parent=0 // pred_check_branch
    %11 = sbr.rel (0) target = $region5
  $region4: #{moco_forward.5} parent=0 // pred_region
    _
  $region5: #{moco_forward.5} parent=0 // pred_fallthru
    _
  // Predicated region
  $region6: #{moco_forward.5} parent=0 // pred_check
    _
  $region7: #{moco_forward.5} parent=0 // pred_check_branch
    %13 = sbr.rel (0) target = $region9
  $region8: #{moco_forward.5} parent=0 // pred_region
    _
  $region9: #{moco_forward.5} parent=0 // pred_fallthru
    _
  // Predicated region
  $region10: #{moco_forward.5} parent=0 // pred_check
    _
  $region11: #{moco_forward.5} parent=0 // pred_check_branch
    %15 = sbr.rel (0) target = $region13
  $region12: #{moco_forward.5} parent=0 // pred_region
    _
  $region13: #{moco_forward.5} parent=0 // pred_fallthru
    _
  %v17 = vld [vmem:[%s0] sm:$0xff]
  %v18 = vld [vmem:[%s0 + $0x8] sm:$0xff]
  %v19 = vmul.f32 %v17, 100.0
  %v20 = vmul.f32 %v18, 100.0
  %v21 = vpack.c.bf16 %v20, %v19
  %v22 = vld [vmem:[%s2] sm:$0xff]
  %v23 = vld [vmem:[%s2 + $0x8] sm:$0xff]
  %v24 = vld [vmem:[%s2 + $0x10] sm:$0xff]
  %v25 = vld [vmem:[%s2 + $0x18] sm:$0xff]
  %v26 = vld [vmem:[%s2 + $0x20] sm:$0xff]
  %v27 = vld [vmem:[%s2 + $0x28] sm:$0xff]
  %v28 = vld [vmem:[%s2 + $0x30] sm:$0xff]
  %v29 = vld [vmem:[%s2 + $0x38] sm:$0xff]
  %v30 = vld [vmem:[%s2 + $0x40] sm:$0xff]
  %v31 = vld [vmem:[%s2 + $0x48] sm:$0xff]
  %v32 = vld [vmem:[%s2 + $0x50] sm:$0xff]
  %v33 = vld [vmem:[%s2 + $0x58] sm:$0xff]
  %v34 = vld [vmem:[%s2 + $0x60] sm:$0xff]
  %v35 = vld [vmem:[%s2 + $0x68] sm:$0xff]
  %v36 = vld [vmem:[%s2 + $0x70] sm:$0xff]
  %v37 = vld [vmem:[%s2 + $0x78] sm:$0xff]
  %v38 = vld [vmem:[%s2 + $0x80] sm:$0xff]
  %v39 = vld [vmem:[%s2 + $0x88] sm:$0xff]
  %v40 = vld [vmem:[%s2 + $0x90] sm:$0xff]
  %v41 = vld [vmem:[%s2 + $0x98] sm:$0xff]
  %v42 = vld [vmem:[%s2 + $0xa0] sm:$0xff]
  %v43 = vld [vmem:[%s2 + $0xa8] sm:$0xff]
  %v44 = vld [vmem:[%s2 + $0xb0] sm:$0xff]
  %v45 = vld [vmem:[%s2 + $0xb8] sm:$0xff]
  %v46 = vld [vmem:[%s2 + $0xc0] sm:$0xff]
  %v47 = vld [vmem:[%s2 + $0xc8] sm:$0xff]
  %v48 = vld [vmem:[%s2 + $0xd0] sm:$0xff]
  %v49 = vld [vmem:[%s2 + $0xd8] sm:$0xff]
  %v50 = vld [vmem:[%s2 + $0xe0] sm:$0xff]
  %v51 = vld [vmem:[%s2 + $0xe8] sm:$0xff]
  %v52 = vld [vmem:[%s2 + $0xf0] sm:$0xff]
  %v53 = vld [vmem:[%s2 + $0xf8] sm:$0xff]
  %v54 = vld [vmem:[%s2 + $0x100] sm:$0xff]
  %v55 = vld [vmem:[%s2 + $0x108] sm:$0xff]
  %v56 = vld [vmem:[%s2 + $0x110] sm:$0xff]
  %v57 = vld [vmem:[%s2 + $0x118] sm:$0xff]
  %v58 = vld [vmem:[%s2 + $0x120] sm:$0xff]
  %v59 = vld [vmem:[%s2 + $0x128] sm:$0xff]
  %v60 = vld [vmem:[%s2 + $0x130] sm:$0xff]
  %v61 = vld [vmem:[%s2 + $0x138] sm:$0xff]
  %v62 = vld [vmem:[%s2 + $0x140] sm:$0xff]
  %v63 = vld [vmem:[%s2 + $0x148] sm:$0xff]
  %v64 = vld [vmem:[%s2 + $0x150] sm:$0xff]
  %v65 = vld [vmem:[%s2 + $0x158] sm:$0xff]
  %v66 = vld [vmem:[%s2 + $0x160] sm:$0xff]
  %v67 = vld [vmem:[%s2 + $0x168] sm:$0xff]
  %v68 = vld [vmem:[%s2 + $0x170] sm:$0xff]
  %v69 = vld [vmem:[%s2 + $0x178] sm:$0xff]
  %v70 = vld [vmem:[%s2 + $0x180] sm:$0xff]
  %v71 = vld [vmem:[%s2 + $0x188] sm:$0xff]
  %v72 = vld [vmem:[%s2 + $0x190] sm:$0xff]
  %v73 = vld [vmem:[%s2 + $0x198] sm:$0xff]
  %v74 = vld [vmem:[%s2 + $0x1a0] sm:$0xff]
  %v75 = vld [vmem:[%s2 + $0x1a8] sm:$0xff]
  %v76 = vld [vmem:[%s2 + $0x1b0] sm:$0xff]
  %v77 = vld [vmem:[%s2 + $0x1b8] sm:$0xff]
  %v78 = vld [vmem:[%s2 + $0x1c0] sm:$0xff]
  %v79 = vld [vmem:[%s2 + $0x1c8] sm:$0xff]
  %v80 = vld [vmem:[%s2 + $0x1d0] sm:$0xff]
  %v81 = vld [vmem:[%s2 + $0x1d8] sm:$0xff]
  %v82 = vld [vmem:[%s2 + $0x1e0] sm:$0xff]
  %v83 = vld [vmem:[%s2 + $0x1e8] sm:$0xff]
  %v84 = vld [vmem:[%s2 + $0x1f0] sm:$0xff]
  %v85 = vld [vmem:[%s2 + $0x1f8] sm:$0xff]
  %v150 = vunpack.c.l.b16 %v22
  %v151 = vunpack.c.h.b16 %v22
  %v152 = vunpack.c.l.b16 %v23
  %v153 = vunpack.c.h.b16 %v23
  %v154 = vunpack.c.l.b16 %v24
  %v155 = vunpack.c.h.b16 %v24
  %v156 = vunpack.c.l.b16 %v25
  %v157 = vunpack.c.h.b16 %v25
  %v158 = vunpack.c.l.b16 %v26
  %v159 = vunpack.c.h.b16 %v26
  %v160 = vunpack.c.l.b16 %v27
  %v161 = vunpack.c.h.b16 %v27
  %v162 = vunpack.c.l.b16 %v28
  %v163 = vunpack.c.h.b16 %v28
  %v164 = vunpack.c.l.b16 %v29
  %v165 = vunpack.c.h.b16 %v29
  %v166 = vunpack.c.l.b16 %v30
  %v167 = vunpack.c.h.b16 %v30
  %v168 = vunpack.c.l.b16 %v31
  %v169 = vunpack.c.h.b16 %v31
  %v170 = vunpack.c.l.b16 %v32
  %v171 = vunpack.c.h.b16 %v32
  %v172 = vunpack.c.l.b16 %v33
  %v173 = vunpack.c.h.b16 %v33
  %v174 = vunpack.c.l.b16 %v34
  %v175 = vunpack.c.h.b16 %v34
  %v176 = vunpack.c.l.b16 %v35
  %v177 = vunpack.c.h.b16 %v35
  %v178 = vunpack.c.l.b16 %v36
  %v179 = vunpack.c.h.b16 %v36
  %v180 = vunpack.c.l.b16 %v37
  %v181 = vunpack.c.h.b16 %v37
  %v182 = vunpack.c.l.b16 %v38
  %v183 = vunpack.c.h.b16 %v38
  %v184 = vunpack.c.l.b16 %v39
  %v185 = vunpack.c.h.b16 %v39
  %v186 = vunpack.c.l.b16 %v40
  %v187 = vunpack.c.h.b16 %v40
  %v188 = vunpack.c.l.b16 %v41
  %v189 = vunpack.c.h.b16 %v41
  %v190 = vunpack.c.l.b16 %v42
  %v191 = vunpack.c.h.b16 %v42
  %v192 = vunpack.c.l.b16 %v43
  %v193 = vunpack.c.h.b16 %v43
  %v194 = vunpack.c.l.b16 %v44
  %v195 = vunpack.c.h.b16 %v44
  %v196 = vunpack.c.l.b16 %v45
  %v197 = vunpack.c.h.b16 %v45
  %v198 = vunpack.c.l.b16 %v46
  %v199 = vunpack.c.h.b16 %v46
  %v200 = vunpack.c.l.b16 %v47
  %v201 = vunpack.c.h.b16 %v47
  %v202 = vunpack.c.l.b16 %v48
  %v203 = vunpack.c.h.b16 %v48
  %v204 = vunpack.c.l.b16 %v49
  %v205 = vunpack.c.h.b16 %v49
  %v206 = vunpack.c.l.b16 %v50
  %v207 = vunpack.c.h.b16 %v50
  %v208 = vunpack.c.l.b16 %v51
  %v209 = vunpack.c.h.b16 %v51
  %v210 = vunpack.c.l.b16 %v52
  %v211 = vunpack.c.h.b16 %v52
  %v212 = vunpack.c.l.b16 %v53
  %v213 = vunpack.c.h.b16 %v53
  %v214 = vunpack.c.l.b16 %v54
  %v215 = vunpack.c.h.b16 %v54
  %v216 = vunpack.c.l.b16 %v55
  %v217 = vunpack.c.h.b16 %v55
  %v218 = vunpack.c.l.b16 %v56
  %v219 = vunpack.c.h.b16 %v56
  %v220 = vunpack.c.l.b16 %v57
  %v221 = vunpack.c.h.b16 %v57
  %v222 = vunpack.c.l.b16 %v58
  %v223 = vunpack.c.h.b16 %v58
  %v224 = vunpack.c.l.b16 %v59
  %v225 = vunpack.c.h.b16 %v59
  %v226 = vunpack.c.l.b16 %v60
  %v227 = vunpack.c.h.b16 %v60
  %v228 = vunpack.c.l.b16 %v61
  %v229 = vunpack.c.h.b16 %v61
  %v230 = vunpack.c.l.b16 %v62
  %v231 = vunpack.c.h.b16 %v62
  %v232 = vunpack.c.l.b16 %v63
  %v233 = vunpack.c.h.b16 %v63
  %v234 = vunpack.c.l.b16 %v64
  %v235 = vunpack.c.h.b16 %v64
  %v236 = vunpack.c.l.b16 %v65
  %v237 = vunpack.c.h.b16 %v65
  %v238 = vunpack.c.l.b16 %v66
  %v239 = vunpack.c.h.b16 %v66
  %v240 = vunpack.c.l.b16 %v67
  %v241 = vunpack.c.h.b16 %v67
  %v242 = vunpack.c.l.b16 %v68
  %v243 = vunpack.c.h.b16 %v68
  %v244 = vunpack.c.l.b16 %v69
  %v245 = vunpack.c.h.b16 %v69
  %v246 = vunpack.c.l.b16 %v70
  %v247 = vunpack.c.h.b16 %v70
  %v248 = vunpack.c.l.b16 %v71
  %v249 = vunpack.c.h.b16 %v71
  %v250 = vunpack.c.l.b16 %v72
  %v251 = vunpack.c.h.b16 %v72
  %v252 = vunpack.c.l.b16 %v73
  %v253 = vunpack.c.h.b16 %v73
  %v254 = vunpack.c.l.b16 %v74
  %v255 = vunpack.c.h.b16 %v74
  %v256 = vunpack.c.l.b16 %v75
  %v257 = vunpack.c.h.b16 %v75
  %v258 = vunpack.c.l.b16 %v76
  %v259 = vunpack.c.h.b16 %v76
  %v260 = vunpack.c.l.b16 %v77
  %v261 = vunpack.c.h.b16 %v77
  %v262 = vunpack.c.l.b16 %v78
  %v263 = vunpack.c.h.b16 %v78
  %v264 = vunpack.c.l.b16 %v79
  %v265 = vunpack.c.h.b16 %v79
  %v266 = vunpack.c.l.b16 %v80
  %v267 = vunpack.c.h.b16 %v80
  %v268 = vunpack.c.l.b16 %v81
  %v269 = vunpack.c.h.b16 %v81
  %v270 = vunpack.c.l.b16 %v82
  %v271 = vunpack.c.h.b16 %v82
  %v272 = vunpack.c.l.b16 %v83
  %v273 = vunpack.c.h.b16 %v83
  %v274 = vunpack.c.l.b16 %v84
  %v275 = vunpack.c.h.b16 %v84
  %v276 = vunpack.c.l.b16 %v85
  %v277 = vunpack.c.h.b16 %v85
  %v278 = vpack.c.b16 %v158, %v150
  %v279 = vpack.c.b16 %v159, %v151
  %v280 = vpack.c.b16 %v160, %v152
  %v281 = vpack.c.b16 %v161, %v153
  %v282 = vpack.c.b16 %v162, %v154
  %v283 = vpack.c.b16 %v163, %v155
  %v284 = vpack.c.b16 %v164, %v156
  %v285 = vpack.c.b16 %v165, %v157
  %v286 = vpack.c.b16 %v174, %v166
  %v287 = vpack.c.b16 %v175, %v167
  %v288 = vpack.c.b16 %v176, %v168
  %v289 = vpack.c.b16 %v177, %v169
  %v290 = vpack.c.b16 %v178, %v170
  %v291 = vpack.c.b16 %v179, %v171
  %v292 = vpack.c.b16 %v180, %v172
  %v293 = vpack.c.b16 %v181, %v173
  %v294 = vpack.c.b16 %v190, %v182
  %v295 = vpack.c.b16 %v191, %v183
  %v296 = vpack.c.b16 %v192, %v184
  %v297 = vpack.c.b16 %v193, %v185
  %v298 = vpack.c.b16 %v194, %v186
  %v299 = vpack.c.b16 %v195, %v187
  %v300 = vpack.c.b16 %v196, %v188
  %v301 = vpack.c.b16 %v197, %v189
  %v302 = vpack.c.b16 %v206, %v198
  %v303 = vpack.c.b16 %v207, %v199
  %v304 = vpack.c.b16 %v208, %v200
  %v305 = vpack.c.b16 %v209, %v201
  %v306 = vpack.c.b16 %v210, %v202
  %v307 = vpack.c.b16 %v211, %v203
  %v308 = vpack.c.b16 %v212, %v204
  %v309 = vpack.c.b16 %v213, %v205
  %v310 = vpack.c.b16 %v222, %v214
  %v311 = vpack.c.b16 %v223, %v215
  %v312 = vpack.c.b16 %v224, %v216
  %v313 = vpack.c.b16 %v225, %v217
  %v314 = vpack.c.b16 %v226, %v218
  %v315 = vpack.c.b16 %v227, %v219
  %v316 = vpack.c.b16 %v228, %v220
  %v317 = vpack.c.b16 %v229, %v221
  %v318 = vpack.c.b16 %v238, %v230
  %v319 = vpack.c.b16 %v239, %v231
  %v320 = vpack.c.b16 %v240, %v232
  %v321 = vpack.c.b16 %v241, %v233
  %v322 = vpack.c.b16 %v242, %v234
  %v323 = vpack.c.b16 %v243, %v235
  %v324 = vpack.c.b16 %v244, %v236
  %v325 = vpack.c.b16 %v245, %v237
  %v326 = vpack.c.b16 %v254, %v246
  %v327 = vpack.c.b16 %v255, %v247
  %v328 = vpack.c.b16 %v256, %v248
  %v329 = vpack.c.b16 %v257, %v249
  %v330 = vpack.c.b16 %v258, %v250
  %v331 = vpack.c.b16 %v259, %v251
  %v332 = vpack.c.b16 %v260, %v252
  %v333 = vpack.c.b16 %v261, %v253
  %v334 = vpack.c.b16 %v270, %v262
  %v335 = vpack.c.b16 %v271, %v263
  %v336 = vpack.c.b16 %v272, %v264
  %v337 = vpack.c.b16 %v273, %v265
  %v338 = vpack.c.b16 %v274, %v266
  %v339 = vpack.c.b16 %v275, %v267
  %v340 = vpack.c.b16 %v276, %v268
  %v341 = vpack.c.b16 %v277, %v269
  %406 = vmatprep.subr.bf16.mxu0 %v279
  %407 = vmatpush1.bf16.msra.mxu0 %v278
  %408 = vmatprep.subr.bf16.mxu0 %v287
  %409 = vmatpush1.bf16.msra.mxu0 %v286
  %410 = vmatprep.subr.bf16.mxu0 %v295
  %411 = vmatpush1.bf16.msra.mxu0 %v294
  %412 = vmatprep.subr.bf16.mxu0 %v303
  %413 = vmatpush1.bf16.msra.mxu0 %v302
  %414 = vmatprep.subr.bf16.mxu0 %v311
  %415 = vmatpush1.bf16.msra.mxu0 %v310
  %416 = vmatprep.subr.bf16.mxu0 %v319
  %417 = vmatpush1.bf16.msra.mxu0 %v318
  %418 = vmatprep.subr.bf16.mxu0 %v327
  %419 = vmatpush1.bf16.msra.mxu0 %v326
  %420 = vmatprep.subr.bf16.mxu0 %v335
  %421 = vmatpush1.bf16.msra.mxu0 %v334
  %422 = vmatprep.subr.bf16.mxu0 0
  %423 = vmatpush1.bf16.msra.mxu0 0
  %424 = vmatprep.subr.bf16.mxu0 0
  %425 = vmatpush1.bf16.msra.mxu0 0
  %426 = vmatprep.subr.bf16.mxu0 0
  %427 = vmatpush1.bf16.msra.mxu0 0
  %428 = vmatprep.subr.bf16.mxu0 0
  %429 = vmatpush1.bf16.msra.mxu0 0
  %430 = vmatprep.subr.bf16.mxu0 0
  %431 = vmatpush1.bf16.msra.mxu0 0
  %432 = vmatprep.subr.bf16.mxu0 0
  %433 = vmatpush1.bf16.msra.mxu0 0
  %434 = vmatprep.subr.bf16.mxu0 0
  %435 = vmatpush1.bf16.msra.mxu0 0
  %436 = vmatprep.subr.bf16.mxu0 0
  %437 = vmatpush1.bf16.msra.mxu0 0
  %438 = vmatprep.mubr.bf16.mxu0 0
  %439 = vmatmul.mubr.bf16.gmra.mrb[0].mxu0 %v21
  %v440 = vpop.f32.mrb[0].mxu0
  %v441 = vadd.f32 0.0, %v440
  %v442 = vpop.f32.mrb[0].mxu0
  %v443 = vadd.f32 0.0, %v442
  %v444 = vpop.f32.mrb[0].mxu0
  %v445 = vadd.f32 0.0, %v444
  %v446 = vpop.f32.mrb[0].mxu0
  %v447 = vadd.f32 0.0, %v446
  %448 = vdwg.mxu0
  %449 = vmatprep.subr.bf16.mxu0 %v281
  %450 = vmatpush1.bf16.msra.mxu0 %v280
  %451 = vmatprep.subr.bf16.mxu0 %v289
  %452 = vmatpush1.bf16.msra.mxu0 %v288
  %453 = vmatprep.subr.bf16.mxu0 %v297
  %454 = vmatpush1.bf16.msra.mxu0 %v296
  %455 = vmatprep.subr.bf16.mxu0 %v305
  %456 = vmatpush1.bf16.msra.mxu0 %v304
  %457 = vmatprep.subr.bf16.mxu0 %v313
  %458 = vmatpush1.bf16.msra.mxu0 %v312
  %459 = vmatprep.subr.bf16.mxu0 %v321
  %460 = vmatpush1.bf16.msra.mxu0 %v320
  %461 = vmatprep.subr.bf16.mxu0 %v329
  %462 = vmatpush1.bf16.msra.mxu0 %v328
  %463 = vmatprep.subr.bf16.mxu0 %v337
  %464 = vmatpush1.bf16.msra.mxu0 %v336
  %465 = vmatprep.subr.bf16.mxu0 0
  %466 = vmatpush1.bf16.msra.mxu0 0
  %467 = vmatprep.subr.bf16.mxu0 0
  %468 = vmatpush1.bf16.msra.mxu0 0
  %469 = vmatprep.subr.bf16.mxu0 0
  %470 = vmatpush1.bf16.msra.mxu0 0
  %471 = vmatprep.subr.bf16.mxu0 0
  %472 = vmatpush1.bf16.msra.mxu0 0
  %473 = vmatprep.subr.bf16.mxu0 0
  %474 = vmatpush1.bf16.msra.mxu0 0
  %475 = vmatprep.subr.bf16.mxu0 0
  %476 = vmatpush1.bf16.msra.mxu0 0
  %477 = vmatprep.subr.bf16.mxu0 0
  %478 = vmatpush1.bf16.msra.mxu0 0
  %479 = vmatprep.subr.bf16.mxu0 0
  %480 = vmatpush1.bf16.msra.mxu0 0
  %481 = vmatprep.mubr.bf16.mxu0 0
  %482 = vmatmul.mubr.bf16.gmra.mrb[0].mxu0 %v21
  %v483 = vpop.f32.mrb[0].mxu0
  %v484 = vadd.f32 0.0, %v483
  %v485 = vpop.f32.mrb[0].mxu0
  %v486 = vadd.f32 0.0, %v485
  %v487 = vpop.f32.mrb[0].mxu0
  %v488 = vadd.f32 0.0, %v487
  %v489 = vpop.f32.mrb[0].mxu0
  %v490 = vadd.f32 0.0, %v489
  %491 = vdwg.mxu0
  %492 = vmatprep.subr.bf16.mxu0 %v283
  %493 = vmatpush1.bf16.msra.mxu0 %v282
  %494 = vmatprep.subr.bf16.mxu0 %v291
  %495 = vmatpush1.bf16.msra.mxu0 %v290
  %496 = vmatprep.subr.bf16.mxu0 %v299
  %497 = vmatpush1.bf16.msra.mxu0 %v298
  %498 = vmatprep.subr.bf16.mxu0 %v307
  %499 = vmatpush1.bf16.msra.mxu0 %v306
  %500 = vmatprep.subr.bf16.mxu0 %v315
  %501 = vmatpush1.bf16.msra.mxu0 %v314
  %502 = vmatprep.subr.bf16.mxu0 %v323
  %503 = vmatpush1.bf16.msra.mxu0 %v322
  %504 = vmatprep.subr.bf16.mxu0 %v331
  %505 = vmatpush1.bf16.msra.mxu0 %v330
  %506 = vmatprep.subr.bf16.mxu0 %v339
  %507 = vmatpush1.bf16.msra.mxu0 %v338
  %508 = vmatprep.subr.bf16.mxu0 0
  %509 = vmatpush1.bf16.msra.mxu0 0
  %510 = vmatprep.subr.bf16.mxu0 0
  %511 = vmatpush1.bf16.msra.mxu0 0
  %512 = vmatprep.subr.bf16.mxu0 0
  %513 = vmatpush1.bf16.msra.mxu0 0
  %514 = vmatprep.subr.bf16.mxu0 0
  %515 = vmatpush1.bf16.msra.mxu0 0
  %516 = vmatprep.subr.bf16.mxu0 0
  %517 = vmatpush1.bf16.msra.mxu0 0
  %518 = vmatprep.subr.bf16.mxu0 0
  %519 = vmatpush1.bf16.msra.mxu0 0
  %520 = vmatprep.subr.bf16.mxu0 0
  %521 = vmatpush1.bf16.msra.mxu0 0
  %522 = vmatprep.subr.bf16.mxu0 0
  %523 = vmatpush1.bf16.msra.mxu0 0
  %524 = vmatprep.mubr.bf16.mxu0 0
  %525 = vmatmul.mubr.bf16.gmra.mrb[0].mxu0 %v21
  %v526 = vpop.f32.mrb[0].mxu0
  %v527 = vadd.f32 0.0, %v526
  %v528 = vpop.f32.mrb[0].mxu0
  %v529 = vadd.f32 0.0, %v528
  %v530 = vpop.f32.mrb[0].mxu0
  %v531 = vadd.f32 0.0, %v530
  %v532 = vpop.f32.mrb[0].mxu0
  %v533 = vadd.f32 0.0, %v532
  %534 = vdwg.mxu0
  %535 = vmatprep.subr.bf16.mxu0 %v285
  %536 = vmatpush1.bf16.msra.mxu0 %v284
  %537 = vmatprep.subr.bf16.mxu0 %v293
  %538 = vmatpush1.bf16.msra.mxu0 %v292
  %539 = vmatprep.subr.bf16.mxu0 %v301
  %540 = vmatpush1.bf16.msra.mxu0 %v300
  %541 = vmatprep.subr.bf16.mxu0 %v309
  %542 = vmatpush1.bf16.msra.mxu0 %v308
  %543 = vmatprep.subr.bf16.mxu0 %v317
  %544 = vmatpush1.bf16.msra.mxu0 %v316
  %545 = vmatprep.subr.bf16.mxu0 %v325
  %546 = vmatpush1.bf16.msra.mxu0 %v324
  %547 = vmatprep.subr.bf16.mxu0 %v333
  %548 = vmatpush1.bf16.msra.mxu0 %v332
  %549 = vmatprep.subr.bf16.mxu0 %v341
  %550 = vmatpush1.bf16.msra.mxu0 %v340
  %551 = vmatprep.subr.bf16.mxu0 0
  %552 = vmatpush1.bf16.msra.mxu0 0
  %553 = vmatprep.subr.bf16.mxu0 0
  %554 = vmatpush1.bf16.msra.mxu0 0
  %555 = vmatprep.subr.bf16.mxu0 0
  %556 = vmatpush1.bf16.msra.mxu0 0
  %557 = vmatprep.subr.bf16.mxu0 0
  %558 = vmatpush1.bf16.msra.mxu0 0
  %559 = vmatprep.subr.bf16.mxu0 0
  %560 = vmatpush1.bf16.msra.mxu0 0
  %561 = vmatprep.subr.bf16.mxu0 0
  %562 = vmatpush1.bf16.msra.mxu0 0
  %563 = vmatprep.subr.bf16.mxu0 0
  %564 = vmatpush1.bf16.msra.mxu0 0
  %565 = vmatprep.subr.bf16.mxu0 0
  %566 = vmatpush1.bf16.msra.mxu0 0
  %567 = vmatprep.mubr.bf16.mxu0 0
  %568 = vmatmul.mubr.bf16.gmra.mrb[0].mxu0 %v21
  %v569 = vpop.f32.mrb[0].mxu0
  %v570 = vadd.f32 0.0, %v569
  %v571 = vpop.f32.mrb[0].mxu0
  %v572 = vadd.f32 0.0, %v571
  %v573 = vpop.f32.mrb[0].mxu0
  %v574 = vadd.f32 0.0, %v573
  %v575 = vpop.f32.mrb[0].mxu0
  %v576 = vadd.f32 0.0, %v575
  %577 = vdwg.mxu0
  %578 = vst [vmem:[%s3] sm:$0xff] %v441
  %579 = vst [vmem:[%s3 + $0x8] sm:$0xff] %v443
  %580 = vst [vmem:[%s3 + $0x10] sm:$0xff] %v484
  %581 = vst [vmem:[%s3 + $0x18] sm:$0xff] %v486
  %582 = vst [vmem:[%s3 + $0x20] sm:$0xff] %v527
  %583 = vst [vmem:[%s3 + $0x28] sm:$0xff] %v529
  %584 = vst [vmem:[%s3 + $0x30] sm:$0xff] %v570
  %585 = vst [vmem:[%s3 + $0x38] sm:$0xff] %v572
  %586 = vst [vmem:[%s3 + $0x40] sm:$0xff] %v445
  %587 = vst [vmem:[%s3 + $0x48] sm:$0xff] %v447
  %588 = vst [vmem:[%s3 + $0x50] sm:$0xff] %v488
  %589 = vst [vmem:[%s3 + $0x58] sm:$0xff] %v490
  %590 = vst [vmem:[%s3 + $0x60] sm:$0xff] %v531
  %591 = vst [vmem:[%s3 + $0x68] sm:$0xff] %v533
  %592 = vst [vmem:[%s3 + $0x70] sm:$0xff] %v574
  %593 = vst [vmem:[%s3 + $0x78] sm:$0xff] %v576
  %p594 = scmp.eq.s32.totalorder 0, 0
  // Predicated region
  $region14: #{moco_forward.5} parent=0 // pred_check
    %p595 = pneg %p594
  $region15: #{moco_forward.5} parent=0 // pred_check_branch
    %597 = sbr.rel (%p595) target = $region17
  $region16: #{moco_forward.5} parent=0 // pred_region
    %v598 = vld [vmem:[%s1] sm:$0xff]
    %v599 = vld [vmem:[%s1 + $0x8] sm:$0xff]
    %v600 = vmul.f32 %v17, %v598
    %v601 = vmul.f32 %v18, %v599
    %602 = vadd.xlane.f32.xlu0 %v600
    %v603 = vpop.xlane.xlu0 %602
    %604 = vadd.xlane.f32.xlu0 %v601
    %v605 = vpop.xlane.xlu0 %604
    %v606 = vmul.f32 %v603, 100.0
    %v607 = vmul.f32 %v605, 100.0
    %608 = vst [vmem:[%s4] sm:$0xff] %v606
    %609 = vst [vmem:[%s4 + $0x8] sm:$0xff] %v607
  $region17: #{moco_forward.5} parent=0 // pred_fallthru
    _
  // Predicated region
  $region18: #{moco_forward.5} parent=0 // pred_check
    _
  $region19: #{moco_forward.5} parent=0 // pred_check_branch
    %611 = sbr.rel (0) target = $region21
  $region20: #{moco_forward.5} parent=0 // pred_region
    _
  $region21: #{moco_forward.5} parent=0 // pred_fallthru
    _
  // Predicated region
  $region22: #{moco_forward.5} parent=0 // pred_check
    _
  $region23: #{moco_forward.5} parent=0 // pred_check_branch
    %613 = sbr.rel (0) target = $region25
  $region24: #{moco_forward.5} parent=0 // pred_region
    _
  $region25: #{moco_forward.5} parent=0 // pred_fallthru
    _
  // Predicated region
  $region26: #{moco_forward.5} parent=0 // pred_check
    _
  $region27: #{moco_forward.5} parent=0 // pred_check_branch
    %615 = sbr.rel (0) target = $region29
  $region28: #{moco_forward.5} parent=0 // pred_region
    _
  $region29: #{moco_forward.5} parent=0 // pred_fallthru
    _
  // Predicated region
  $region30: #{moco_forward.5} parent=0 // pred_check
    _
  $region31: #{moco_forward.5} parent=0 // pred_check_branch
    %617 = sbr.rel (0) target = $region33
  $region32: #{moco_forward.5} parent=0 // pred_region
    _
  $region33: #{moco_forward.5} parent=0 // pred_fallthru
    _

</llo_original>
